<compile_context>
chip_gen: v5e
topology: v5e:2x2
jax: 0.10.0
libtpu: 0.0.40
codegen_flags: <defaults>
</compile_context>

<pallas_src>
import functools

import jax
import jax.numpy as jnp
from jax.experimental import pallas as pl
from jax.experimental.pallas import tpu as pltpu


def _gcn_kernel(adj_ref, feat_ref, out_ref, deg_ref, *, tk, feat_resident):
    # adj_ref:  (tm, tk)            int8  adjacency tile (dst rows i, src cols k)
    # feat_ref: (Nk, F) or (tk, F)  bf16  source features (resident or streamed)
    # out_ref:  (tm, F)             f32   output block == accumulator (resident over k)
    # deg_ref:  (tm, 1)             f32   in-degree accumulator scratch
    k = pl.program_id(1)

    @pl.when(k == 0)
    def _():
        out_ref[...] = jnp.zeros_like(out_ref)
        deg_ref[...] = jnp.zeros_like(deg_ref)

    # int8 0/1 -> bf16 (exact); bf16 x bf16 MXU matmul with f32 accumulation.
    adj = adj_ref[...].astype(jnp.bfloat16)                      # (tm, tk)

    # In-degree partial sum, accumulated in f32 (exact for 0/1 entries; bf16
    # accumulation would lose exactness past 256).
    deg_ref[...] += jnp.sum(adj, axis=-1, keepdims=True, dtype=jnp.float32)

    if feat_resident:
        # Whole feature matrix lives in VMEM; slice the k-th contraction band.
        feat = feat_ref[pl.ds(pl.multiple_of(k * tk, tk), tk), :]
    else:
        feat = feat_ref[...]                                     # (tk, F)

    out_ref[...] += jnp.dot(adj, feat, preferred_element_type=jnp.float32)

    @pl.when(k == pl.num_programs(1) - 1)
    def _():
        # Mean reduce: invert the (tm, 1) degree once, broadcast-multiply.
        # Isolated (and padded) nodes have out == 0, so the clamp keeps them 0.
        inv = 1.0 / jnp.maximum(deg_ref[...], 1.0)
        out_ref[...] = out_ref[...] * inv


def gcn_forward(adj, feature, *, tm=512, tk=1024, feat_resident_bytes=8 << 20):
    """GCN mean-aggregation layer: out[v] = mean_{u: u->v} feature[u].

    adj:     (N, N) 0/1 adjacency, adj[v, u] = 1 if edge u -> v.  Ideally
             already stored as int8 (avoids a separate N^2 cast pass).
             NOTE: entries must be 0/1 -- weighted adjacencies would silently
             change the "degree = row sum" mean semantics.
    feature: (N, F) node features (ideally already bf16).
    returns: (N, F) float32 mean-aggregated node features.
    """
    N, F = feature.shape
    assert adj.shape == (N, N)

    # Compact dtypes for the HBM streams (no-ops if the caller already complies).
    if adj.dtype != jnp.int8:
        adj = adj.astype(jnp.int8)
    if feature.dtype != jnp.bfloat16:
        feature = feature.astype(jnp.bfloat16)

    tm = min(tm, N)
    tk = min(tk, N)

    # Pad to tile multiples instead of asserting divisibility.
    n_rows = pl.cdiv(N, tm) * tm
    n_cols = pl.cdiv(N, tk) * tk
    if n_rows != N or n_cols != N:
        adj = jnp.pad(adj, ((0, n_rows - N), (0, n_cols - N)))
    if n_cols != N:
        feature = jnp.pad(feature, ((0, n_cols - N), (0, 0)))

    # Keep the feature matrix VMEM-resident (single DMA) when it fits a
    # conservative budget; otherwise stream (tk, F) blocks per k step.
    feat_bytes = n_cols * F * 2
    feat_resident = feat_bytes <= feat_resident_bytes

    if feat_resident:
        feat_spec = pl.BlockSpec((n_cols, F), lambda i, k: (0, 0))
        feat_buf_bytes = 2 * feat_bytes
    else:
        feat_spec = pl.BlockSpec((tk, F), lambda i, k: (k, 0))
        feat_buf_bytes = 2 * tk * F * 2

    # Explicit VMEM budget: adjacency double buffer + feature buffers +
    # resident f32 output block (+ slack), capped below v7x's 64 MiB per-TC.
    vmem_needed = (2 * tm * tk            # adjacency (int8) double buffer
                   + feat_buf_bytes       # features
                   + 2 * tm * F * 4       # output block
                   + 2 * tm * 4           # degree scratch
                   + (2 << 20))           # slack
    vmem_limit = int(min(max(vmem_needed, 16 << 20), 60 << 20))

    grid = (n_rows // tm, n_cols // tk)
    kernel = functools.partial(_gcn_kernel, tk=tk, feat_resident=feat_resident)

    out = pl.pallas_call(
        kernel,
        out_shape=jax.ShapeDtypeStruct((n_rows, F), jnp.float32),
        grid_spec=pltpu.PrefetchScalarGridSpec(
            num_scalar_prefetch=0,
            grid=grid,
            in_specs=[
                # adjacency tile: rows follow i, cols follow k (contraction)
                pl.BlockSpec((tm, tk), lambda i, k: (i, k)),
                feat_spec,
            ],
            # output block constant across k => VMEM-resident accumulator
            out_specs=pl.BlockSpec((tm, F), lambda i, k: (i, 0)),
            scratch_shapes=[
                pltpu.VMEM((tm, 1), jnp.float32),   # in-degree accumulator
            ],
        ),
        compiler_params=pltpu.CompilerParams(
            dimension_semantics=("parallel", "arbitrary"),
            vmem_limit_bytes=vmem_limit),
    )(adj, feature)

    return out[:N] if n_rows != N else out


if __name__ == "__main__":
    key = jax.random.PRNGKey(0)
    k_adj, k_feat = jax.random.split(key)

    N = 512   # number of nodes
    F = 128   # feature dimension

    # Deterministic random directed graph (~10% density), no self loops,
    # stored directly as int8 0/1 (the kernel's native adjacency dtype, so no
    # wrapper-side cast pass runs).
    adj = jax.random.bernoulli(k_adj, p=0.1, shape=(N, N))
    adj = jnp.logical_and(adj, ~jnp.eye(N, dtype=bool)).astype(jnp.int8)

    feature = jax.random.normal(k_feat, (N, F), dtype=jnp.float32)

    # tm=256, tk=256 -> grid (2, 2): exercises the parallel row axis, the
    # K accumulation, and the VMEM-resident feature path.
    out = gcn_forward(adj, feature, tm=256, tk=256)
    out = jax.block_until_ready(out)

    # Streamed-feature path (what very large graphs fall back to).
    out_stream = gcn_forward(adj, feature, tm=256, tk=256,
                             feat_resident_bytes=0)
    out_stream = jax.block_until_ready(out_stream)

    # Pure-JAX f32 reference.
    adj_f = adj.astype(jnp.float32)
    deg = jnp.sum(adj_f, axis=-1, keepdims=True)
    ref = (adj_f @ feature) / jnp.maximum(deg, 1.0)

    assert out.shape == (N, F)
    # Adjacency (int8 0/1 -> bf16) and degrees are exact; the only error
    # source is the bf16 cast of the features.
    assert jnp.allclose(out, ref, atol=2e-2, rtol=2e-2)
    assert jnp.allclose(out_stream, ref, atol=2e-2, rtol=2e-2)
    print("KERNEL_OK")
</pallas_src>

<mosaic_0001>
module attributes {stable_mosaic.version = 11 : i64} {
  func.func @_gcn_kernel(%arg0: i32, %arg1: i32, %arg2: memref<256x256xi8, #tpu.memory_space<vmem>>, %arg3: memref<512x128xbf16, #tpu.memory_space<vmem>>, %arg4: memref<256x128xf32, #tpu.memory_space<vmem>>, %arg5: memref<256x1xf32, #tpu.memory_space<vmem>>) attributes {dimension_semantics = [#tpu.dimension_semantics<parallel>, #tpu.dimension_semantics<arbitrary>], iteration_bounds = array<i64: 2, 2>, scalar_prefetch = 0 : i64, scratch_operands = 1 : i64, tpu.core_type = #tpu.core_type<tc>, window_params = [{transform_indices = @transform_0, window_bounds = array<i64: 256, 256>}, {pipeline_mode = #tpu.pipeline_mode<synchronous>, transform_indices = @transform_1, window_bounds = array<i64: 512, 128>}, {transform_indices = @transform_2, window_bounds = array<i64: 256, 128>}]} {
    %c0_i32 = arith.constant 0 : i32
    %0 = arith.cmpi eq, %arg1, %c0_i32 : i32
    %1 = arith.extui %0 : i1 to i32
    %c0_i32_0 = arith.constant 0 : i32
    %2 = arith.cmpi ne, %1, %c0_i32_0 : i32
    scf.if %2 {
      %cst_13 = arith.constant 0.000000e+00 : f32
      %22 = vector.broadcast %cst_13 : f32 to vector<256x128xf32>
      %c0_14 = arith.constant 0 : index
      %c0_15 = arith.constant 0 : index
      %23 = vector.load %arg4[%c0_14, %c0_15] : memref<256x128xf32, #tpu.memory_space<vmem>>, vector<256x128xf32>
      tpu.vector_store %arg4[%c0_14, %c0_15], %22 {strides = array<i32>} : memref<256x128xf32, #tpu.memory_space<vmem>>, vector<256x128xf32>,
      %cst_16 = arith.constant 0.000000e+00 : f32
      %24 = vector.broadcast %cst_16 : f32 to vector<256x1xf32>
      %c0_17 = arith.constant 0 : index
      %c0_18 = arith.constant 0 : index
      %25 = vector.load %arg5[%c0_17, %c0_18] : memref<256x1xf32, #tpu.memory_space<vmem>>, vector<256x1xf32>
      tpu.vector_store %arg5[%c0_17, %c0_18], %24 {strides = array<i32>} : memref<256x1xf32, #tpu.memory_space<vmem>>, vector<256x1xf32>,
    } else {
    }
    %c0 = arith.constant 0 : index
    %c0_1 = arith.constant 0 : index
    %3 = vector.load %arg2[%c0, %c0_1] : memref<256x256xi8, #tpu.memory_space<vmem>>, vector<256x256xi8>
    %4 = arith.sitofp %3 : vector<256x256xi8> to vector<256x256xbf16>
    %c0_2 = arith.constant 0 : index
    %c0_3 = arith.constant 0 : index
    %5 = vector.load %arg5[%c0_2, %c0_3] : memref<256x1xf32, #tpu.memory_space<vmem>>, vector<256x1xf32>
    %6 = arith.extf %4 : vector<256x256xbf16> to vector<256x256xf32>
    %cst = arith.constant dense<0.000000e+00> : vector<256xf32>
    %7 = vector.multi_reduction <add>, %6, %cst [1] : vector<256x256xf32> to vector<256xf32>
    %8 = vector.shape_cast %7 : vector<256xf32> to vector<256x1xf32>
    %9 = arith.addf %5, %8 : vector<256x1xf32>
    %c0_4 = arith.constant 0 : index
    %c0_5 = arith.constant 0 : index
    %10 = vector.load %arg5[%c0_4, %c0_5] : memref<256x1xf32, #tpu.memory_space<vmem>>, vector<256x1xf32>
    tpu.vector_store %arg5[%c0_4, %c0_5], %9 {strides = array<i32>} : memref<256x1xf32, #tpu.memory_space<vmem>>, vector<256x1xf32>,
    %c256_i32 = arith.constant 256 : i32
    %11 = arith.muli %arg1, %c256_i32 : i32
    %12 = tpu.assume_multiple %11, 256 : i32
    %13 = arith.index_cast %12 : i32 to index
    %c0_6 = arith.constant 0 : index
    %14 = vector.load %arg3[%13, %c0_6] : memref<512x128xbf16, #tpu.memory_space<vmem>>, vector<256x128xbf16>
    %c0_7 = arith.constant 0 : index
    %c0_8 = arith.constant 0 : index
    %15 = vector.load %arg4[%c0_7, %c0_8] : memref<256x128xf32, #tpu.memory_space<vmem>>, vector<256x128xf32>
    %cst_9 = arith.constant dense<0.000000e+00> : vector<256x128xf32>
    %16 = tpu.matmul %4, %14, %cst_9 {dimension_numbers = #tpu.dot_dimension_numbers<[1], [0], [0], [1], [0, 0, 1, 1], [], []>} : vector<256x256xbf16>, vector<256x128xbf16>, vector<256x128xf32> -> vector<256x128xf32>
    %17 = arith.addf %15, %16 : vector<256x128xf32>
    %c0_10 = arith.constant 0 : index
    %c0_11 = arith.constant 0 : index
    %18 = vector.load %arg4[%c0_10, %c0_11] : memref<256x128xf32, #tpu.memory_space<vmem>>, vector<256x128xf32>
    tpu.vector_store %arg4[%c0_10, %c0_11], %17 {strides = array<i32>} : memref<256x128xf32, #tpu.memory_space<vmem>>, vector<256x128xf32>,
    %c1_i32 = arith.constant 1 : i32
    %19 = arith.cmpi eq, %arg1, %c1_i32 : i32
    %20 = arith.extui %19 : i1 to i32
    %c0_i32_12 = arith.constant 0 : i32
    %21 = arith.cmpi ne, %20, %c0_i32_12 : i32
    scf.if %21 {
      %c0_13 = arith.constant 0 : index
      %c0_14 = arith.constant 0 : index
      %22 = vector.load %arg5[%c0_13, %c0_14] : memref<256x1xf32, #tpu.memory_space<vmem>>, vector<256x1xf32>
      %cst_15 = arith.constant 1.000000e+00 : f32
      %23 = vector.broadcast %cst_15 : f32 to vector<256x1xf32>
      %24 = arith.maximumf %22, %23 : vector<256x1xf32>
      %cst_16 = arith.constant 1.000000e+00 : f32
      %25 = vector.broadcast %cst_16 : f32 to vector<256x1xf32>
      %26 = arith.divf %25, %24 : vector<256x1xf32>
      %c0_17 = arith.constant 0 : index
      %c0_18 = arith.constant 0 : index
      %27 = vector.load %arg4[%c0_17, %c0_18] : memref<256x128xf32, #tpu.memory_space<vmem>>, vector<256x128xf32>
      %28 = vector.broadcast %26 : vector<256x1xf32> to vector<256x128xf32>
      %29 = arith.mulf %27, %28 : vector<256x128xf32>
      %c0_19 = arith.constant 0 : index
      %c0_20 = arith.constant 0 : index
      %30 = vector.load %arg4[%c0_19, %c0_20] : memref<256x128xf32, #tpu.memory_space<vmem>>, vector<256x128xf32>
      tpu.vector_store %arg4[%c0_19, %c0_20], %29 {strides = array<i32>} : memref<256x128xf32, #tpu.memory_space<vmem>>, vector<256x128xf32>,
    } else {
    }
    return
  }
  func.func @transform_0(%arg0: i32, %arg1: i32) -> (i32, i32) {
    %c0_i32 = arith.constant 0 : i32
    return %arg0, %arg1 : i32, i32
  }
  func.func @transform_1(%arg0: i32, %arg1: i32) -> (i32, i32) {
    %c0_i32 = arith.constant 0 : i32
    %c0_i32_0 = arith.constant 0 : i32
    %c0_i32_1 = arith.constant 0 : i32
    return %c0_i32, %c0_i32_0 : i32, i32
  }
  func.func @transform_2(%arg0: i32, %arg1: i32) -> (i32, i32) {
    %c0_i32 = arith.constant 0 : i32
    %c0_i32_0 = arith.constant 0 : i32
    return %arg0, %c0_i32 : i32, i32
  }
}

</mosaic_0001>

<llo_original>
// kernel: tpu_custom_call.1
$region0: #{tpu_custom_call.1}
  #allocation0 [shape = 'u32[]', space=smem, size = 0x4, offset = 0x4, fixed_abs, tag = 'smem constant byte address 0x4 - core index']
  #allocation1 [shape = 'u32[72,128]{1,0:T(1,128)}', space=vmem, size = 0x9000, scoped, tag = 'internal scratch']
  #allocation2 [shape = 'f32[256,1]{1,0:T(8,128)}', space=vmem, size = 0x20000, scoped, tag = 'scratch operand']
  %s0 = inlined_call_operand.hbm [shape: s8[512,512], index: 0, kind: input, shape index: {}]
  %s1 = inlined_call_operand.hbm [shape: bf16[512,128], index: 1, kind: input, shape index: {}]
  %s2 = inlined_call_operand.hbm [shape: f32[512,128], index: 2, kind: output, shape index: {}]
  %s3 = sld [smem:[#allocation0]]
  $region57: #{tpu_custom_call.1} parent=0
    _
  %s5 = ssub.s32 1, %s3
  %s6 = scalar_select 0, %s5, %s3
  $region1: #{tpu_custom_call.1} parent=0
    #allocation3 [shape = 'u8[131072]{0}', space=vmem, size = 0x20000, scoped, tag = 'input window, operand 0']
    #allocation4 [shape = 's32[2]{0}', space=sflag, size = 0x8, scoped, tag = 'scoped memory for tpu_custom_call.1']
    #allocation5 [shape = 's32[2]{0}', space=sflag, size = 0x8, scoped, tag = 'scoped memory for tpu_custom_call.1']
    #allocation6 [shape = 'u8[131072]{0}', space=vmem, size = 0x20000, scoped, tag = 'input window, operand 1, single buffered']
    #allocation7 [shape = 's32[1]{0}', space=sflag, size = 0x4, scoped, tag = 'scoped memory for tpu_custom_call.1']
    #allocation8 [shape = 'u8[262144]{0}', space=vmem, size = 0x40000, scoped, tag = 'output window, operand 0']
    %7 = vsyncpa [#allocation4], 0
    %s8 = scalar_lea.sflag [#allocation4], 1
    %9 = vsyncpa %s8, 0
    %10 = vsyncpa [#allocation7], 0
    %11 = vsyncpa [#allocation5], 0
    %s12 = scalar_lea.sflag [#allocation5], 1
    %13 = vsyncpa %s12, 0
    loop: start=0, step=1, limit=6
    $region2: #{tpu_custom_call.1} parent=1 // loop_pre_header
      _
    $region3: #{tpu_custom_call.1} parent=1 // loop_header
      %s15 = sphi 0, %s19
      %p16 = scmp.ge.s32.totalorder %s15, 6
      %s22 = sphi 0, %s34
      %s23 = sphi 0, %s30
      %s24 = sphi 0, %s22
      %s25 = sphi 0, %s23
      %s26 = sphi 0, %s24
      %s27 = sphi 0, %s25
      %s39 = sphi 0, %s41
      %s42 = sphi 0, %s39
      %s43 = sphi 0, %s42
      %s59 = sphi 0, %s43
      %s63 = sphi 0, %s63
      %s65 = sphi 0, %s63
      %s66 = sphi 0, %s65
      %s80 = sphi 0, %s66
      %s86 = sphi 0, %s88
      %s89 = sphi 0, %s86
      %s90 = sphi 0, %s89
      %s106 = sphi 0, %s90
    $region4: #{tpu_custom_call.1} parent=1 // loop_header_branch
      %18 = sbr.rel (%p16) target = $region8
    $region5: #{tpu_custom_call.1} parent=1 // loop_body
      %s20 = ssub.s32 %s15, 1
      %s21 = ssub.s32 %s15, 2
      %s28 = sadd.s32 1, %s23
      %p29 = scmp.ge.s32.totalorder %s28, 2
      %s30 = scalar_select %p29, 0, %s28
      %s31 = sadd.s32 1, %s22
      %s32 = scalar_select %p29, %s31, %s22
      %p33 = scmp.ge.s32.totalorder %s32, 2
      %s34 = scalar_select %p33, 0, %s32
      %s35 = ssub.s32 %s22, %s34
      %s36 = ssub.s32 %s23, %s30
      %s37 = sor.u32 %s35, %s36
      %p38 = scmp.eq.s32.totalorder %s37, 0
      %s40 = sadd.s32 %s39, 1
      %s41 = scalar_select %p38, %s39, %s40
      %p44 = pneg %p38
      %p45 = scmp.eq.s32.totalorder %s15, 3
      %p46 = por %p44, %p45
      %p47 = scmp.ne.s32.totalorder %s39, %s42
      %p48 = scmp.eq.s32.totalorder %s15, 0
      %p49 = por %p47, %p48
      %p50 = scmp.ne.s32.totalorder %s39, %s42
      %p51 = scmp.eq.s32.totalorder %s20, 3
      %p52 = por %p50, %p51
      %p53 = scmp.ne.s32.totalorder %s42, %s43
      %p54 = scmp.eq.s32.totalorder %s20, 0
      %p55 = por %p53, %p54
      %p56 = scmp.ne.s32.totalorder %s42, %s43
      %p57 = scmp.eq.s32.totalorder %s21, 3
      %p58 = por %p56, %p57
      %p60 = scmp.ne.s32.totalorder %s43, %s59
      %p61 = scmp.eq.s32.totalorder %s21, 0
      %p62 = por %p60, %p61
      %s64 = sadd.s32 %s63, 1
      %p67 = scmp.eq.s32.totalorder %s15, 3
      %p68 = scmp.ne.s32.totalorder %s63, %s65
      %p69 = scmp.eq.s32.totalorder %s15, 0
      %p70 = por %p68, %p69
      %p71 = scmp.ne.s32.totalorder %s63, %s65
      %p72 = scmp.eq.s32.totalorder %s20, 3
      %p73 = por %p71, %p72
      %p74 = scmp.ne.s32.totalorder %s65, %s66
      %p75 = scmp.eq.s32.totalorder %s20, 0
      %p76 = por %p74, %p75
      %p77 = scmp.ne.s32.totalorder %s65, %s66
      %p78 = scmp.eq.s32.totalorder %s21, 3
      %p79 = por %p77, %p78
      %p81 = scmp.ne.s32.totalorder %s66, %s80
      %p82 = scmp.eq.s32.totalorder %s21, 0
      %p83 = por %p81, %p82
      %s84 = ssub.s32 %s22, %s34
      %p85 = scmp.eq.s32.totalorder %s84, 0
      %s87 = sadd.s32 %s86, 1
      %s88 = scalar_select %p85, %s86, %s87
      %p91 = pneg %p85
      %p92 = scmp.eq.s32.totalorder %s15, 3
      %p93 = por %p91, %p92
      %p94 = scmp.ne.s32.totalorder %s86, %s89
      %p95 = scmp.eq.s32.totalorder %s15, 0
      %p96 = por %p94, %p95
      %p97 = scmp.ne.s32.totalorder %s86, %s89
      %p98 = scmp.eq.s32.totalorder %s20, 3
      %p99 = por %p97, %p98
      %p100 = scmp.ne.s32.totalorder %s89, %s90
      %p101 = scmp.eq.s32.totalorder %s20, 0
      %p102 = por %p100, %p101
      %p103 = scmp.ne.s32.totalorder %s89, %s90
      %p104 = scmp.eq.s32.totalorder %s21, 3
      %p105 = por %p103, %p104
      %p107 = scmp.ne.s32.totalorder %s90, %s106
      %p108 = scmp.eq.s32.totalorder %s21, 0
      %p109 = por %p107, %p108
      %p110 = scmp.le.s32.totalorder 1, %s15
      %p111 = scmp.lt.s32.totalorder %s15, 5
      %p112 = pnand %p110, %p111
      %p113 = pneg %p112
      // Predicated region
      $region9: #{tpu_custom_call.1} parent=5 // pred_check
        _
      $region10: #{tpu_custom_call.1} parent=5 // pred_check_branch
        %115 = sbr.rel (%p112) target = $region12
      $region11: #{tpu_custom_call.1} parent=5 // pred_region
        %s116 = ssub.s32 %s15, 1
        // Predicated region
        $region13: #{tpu_custom_call.1} parent=11 // pred_check
          %p117 = pneg %p76
        $region14: #{tpu_custom_call.1} parent=11 // pred_check_branch
          %119 = sbr.rel (%p117) target = $region16
        $region15: #{tpu_custom_call.1} parent=11 // pred_region
          %121 = vsyncadd [#allocation7], 0
          %s122 = sshll.u32 %s1, 4
          %s123 = int_to_ptr.hbm [resolvable:$true] %s122
          %s124 = sshll.u32 [#allocation6], 4
          %s125 = int_to_ptr.vmem [resolvable:$true] %s124
          %130 = dma.hbm_to_vmem [thread:$0]  %s123, 4096, %s125, [#allocation7], 64, 64, 4
        $region16: #{tpu_custom_call.1} parent=11 // pred_fallthru
          _
      $region12: #{tpu_custom_call.1} parent=5 // pred_fallthru
        _
      %p131 = scmp.lt.s32.totalorder %s15, 4
      // Predicated region
      $region17: #{tpu_custom_call.1} parent=5 // pred_check
        %p132 = pneg %p131
      $region18: #{tpu_custom_call.1} parent=5 // pred_check_branch
        %134 = sbr.rel (%p132) target = $region20
      $region19: #{tpu_custom_call.1} parent=5 // pred_region
        // Predicated region
        $region21: #{tpu_custom_call.1} parent=19 // pred_check
          %p135 = pneg %p49
        $region22: #{tpu_custom_call.1} parent=19 // pred_check_branch
          %137 = sbr.rel (%p135) target = $region24
        $region23: #{tpu_custom_call.1} parent=19 // pred_region
          %s138 = sand.u32 %s39, 1
          %s139 = scalar_lea.sflag [#allocation4], %s138
          %s140 = sand.u32 %s39, 1
          %s141 = smul.addr %s140, 128
          %s142 = scalar_lea.vmem [#allocation3], %s141
          %s143 = smul.u32 8, %s22
          %s144 = smul.u32 2, %s23
          %146 = vsyncadd %s139, 0
          %s147 = smul.addr %s143, 4
          %s148 = sadd.s32 %s144, %s147
          %s149 = smul.addr %s148, 8
          %s150 = scalar_lea.hbm %s0, %s149
          %s151 = sshll.u32 %s150, 4
          %s152 = int_to_ptr.hbm [resolvable:$true] %s151
          %s153 = sshll.u32 %s142, 4
          %s154 = int_to_ptr.vmem [resolvable:$true] %s153
          %159 = dma.hbm_to_vmem [thread:$0]  %s152, 2048, %s154, %s139, 512, 256, 16
        $region24: #{tpu_custom_call.1} parent=19 // pred_fallthru
          _
      $region20: #{tpu_custom_call.1} parent=5 // pred_fallthru
        _
      %p160 = scmp.le.s32.totalorder 1, %s15
      %p161 = scmp.lt.s32.totalorder %s15, 5
      %p162 = pnand %p160, %p161
      %p163 = pneg %p162
      // Predicated region
      $region25: #{tpu_custom_call.1} parent=5 // pred_check
        _
      $region26: #{tpu_custom_call.1} parent=5 // pred_check_branch
        %165 = sbr.rel (%p162) target = $region28
      $region27: #{tpu_custom_call.1} parent=5 // pred_region
        %s166 = ssub.s32 %s15, 1
        %s167 = sand.u32 %s42, 1
        %s168 = scalar_lea.sflag [#allocation4], %s167
        %s169 = sand.u32 %s42, 1
        %s170 = smul.addr %s169, 128
        %s171 = scalar_lea.vmem [#allocation3], %s170
        // Predicated region
        $region29: #{tpu_custom_call.1} parent=27 // pred_check
          %p172 = pneg %p55
        $region30: #{tpu_custom_call.1} parent=27 // pred_check_branch
          %174 = sbr.rel (%p172) target = $region32
        $region31: #{tpu_custom_call.1} parent=27 // pred_region
          %176 = dma.done %s168, 2048
        $region32: #{tpu_custom_call.1} parent=27 // pred_fallthru
          _
        // Predicated region
        $region33: #{tpu_custom_call.1} parent=27 // pred_check
          %p177 = pneg %p76
        $region34: #{tpu_custom_call.1} parent=27 // pred_check_branch
          %179 = sbr.rel (%p177) target = $region36
        $region35: #{tpu_custom_call.1} parent=27 // pred_region
          %181 = dma.done [#allocation7], 4096
        $region36: #{tpu_custom_call.1} parent=27 // pred_fallthru
          _
        %s182 = sand.u32 %s42, 1
        %s183 = scalar_lea.sflag [#allocation4], %s182
        %s184 = sand.u32 %s42, 1
        %s185 = smul.addr %s184, 128
        %s186 = scalar_lea.vmem [#allocation3], %s185
        %p187 = pneg %p55
        %p188 = pneg %p52
        %p189 = pneg %p76
        %p190 = pneg %p73
        %p191 = pneg %p102
        %p192 = pneg %p99
        %s193 = sand.u32 %s89, 1
        %s194 = scalar_lea.sflag [#allocation5], %s193
        %s195 = sand.u32 %s89, 1
        %s196 = smul.addr %s195, 256
        %s197 = scalar_lea.vmem [#allocation8], %s196
        %s198 = smul.u32 8, %s24
        %s199 = smul.u32 2, %s25
        %s200 = smul.u32 32, %s24
        %p201 = scmp.eq.s32.totalorder %s25, 0
        // Predicated region
        $region37: #{tpu_custom_call.1} parent=27 // pred_check
          %p202 = pneg %p201
        $region38: #{tpu_custom_call.1} parent=27 // pred_check_branch
          %204 = sbr.rel (%p202) target = $region40
        $region39: #{tpu_custom_call.1} parent=27 // pred_region
          %205 = vst [vmem:[%s197] sm:$0xff] 0.0
          %206 = vst [vmem:[%s197 + $0x8] sm:$0xff] 0.0
          %207 = vst [vmem:[%s197 + $0x10] sm:$0xff] 0.0
          %208 = vst [vmem:[%s197 + $0x18] sm:$0xff] 0.0
          %209 = vst [vmem:[%s197 + $0x20] sm:$0xff] 0.0
          %210 = vst [vmem:[%s197 + $0x28] sm:$0xff] 0.0
          %211 = vst [vmem:[%s197 + $0x30] sm:$0xff] 0.0
          %212 = vst [vmem:[%s197 + $0x38] sm:$0xff] 0.0
          %213 = vst [vmem:[%s197 + $0x40] sm:$0xff] 0.0
          %214 = vst [vmem:[%s197 + $0x48] sm:$0xff] 0.0
          %215 = vst [vmem:[%s197 + $0x50] sm:$0xff] 0.0
          %216 = vst [vmem:[%s197 + $0x58] sm:$0xff] 0.0
          %217 = vst [vmem:[%s197 + $0x60] sm:$0xff] 0.0
          %218 = vst [vmem:[%s197 + $0x68] sm:$0xff] 0.0
          %219 = vst [vmem:[%s197 + $0x70] sm:$0xff] 0.0
          %220 = vst [vmem:[%s197 + $0x78] sm:$0xff] 0.0
          %221 = vst [vmem:[%s197 + $0x80] sm:$0xff] 0.0
          %222 = vst [vmem:[%s197 + $0x88] sm:$0xff] 0.0
          %223 = vst [vmem:[%s197 + $0x90] sm:$0xff] 0.0
          %224 = vst [vmem:[%s197 + $0x98] sm:$0xff] 0.0
          %225 = vst [vmem:[%s197 + $0xa0] sm:$0xff] 0.0
          %226 = vst [vmem:[%s197 + $0xa8] sm:$0xff] 0.0
          %227 = vst [vmem:[%s197 + $0xb0] sm:$0xff] 0.0
          %228 = vst [vmem:[%s197 + $0xb8] sm:$0xff] 0.0
          %229 = vst [vmem:[%s197 + $0xc0] sm:$0xff] 0.0
          %230 = vst [vmem:[%s197 + $0xc8] sm:$0xff] 0.0
          %231 = vst [vmem:[%s197 + $0xd0] sm:$0xff] 0.0
          %232 = vst [vmem:[%s197 + $0xd8] sm:$0xff] 0.0
          %233 = vst [vmem:[%s197 + $0xe0] sm:$0xff] 0.0
          %234 = vst [vmem:[%s197 + $0xe8] sm:$0xff] 0.0
          %235 = vst [vmem:[%s197 + $0xf0] sm:$0xff] 0.0
          %236 = vst [vmem:[%s197 + $0xf8] sm:$0xff] 0.0
          %vm237 = vcmask 7168
          %238 = vst.msk [vmem:[#allocation2] sm:$0xff] %vm237, 0.0
          %239 = vst.msk [vmem:[#allocation2 + $0x8] sm:$0xff] %vm237, 0.0
          %240 = vst.msk [vmem:[#allocation2 + $0x10] sm:$0xff] %vm237, 0.0
          %241 = vst.msk [vmem:[#allocation2 + $0x18] sm:$0xff] %vm237, 0.0
          %242 = vst.msk [vmem:[#allocation2 + $0x20] sm:$0xff] %vm237, 0.0
          %243 = vst.msk [vmem:[#allocation2 + $0x28] sm:$0xff] %vm237, 0.0
          %244 = vst.msk [vmem:[#allocation2 + $0x30] sm:$0xff] %vm237, 0.0
          %245 = vst.msk [vmem:[#allocation2 + $0x38] sm:$0xff] %vm237, 0.0
          %246 = vst.msk [vmem:[#allocation2 + $0x40] sm:$0xff] %vm237, 0.0
          %247 = vst.msk [vmem:[#allocation2 + $0x48] sm:$0xff] %vm237, 0.0
          %248 = vst.msk [vmem:[#allocation2 + $0x50] sm:$0xff] %vm237, 0.0
          %249 = vst.msk [vmem:[#allocation2 + $0x58] sm:$0xff] %vm237, 0.0
          %250 = vst.msk [vmem:[#allocation2 + $0x60] sm:$0xff] %vm237, 0.0
          %251 = vst.msk [vmem:[#allocation2 + $0x68] sm:$0xff] %vm237, 0.0
          %252 = vst.msk [vmem:[#allocation2 + $0x70] sm:$0xff] %vm237, 0.0
          %253 = vst.msk [vmem:[#allocation2 + $0x78] sm:$0xff] %vm237, 0.0
          %254 = vst.msk [vmem:[#allocation2 + $0x80] sm:$0xff] %vm237, 0.0
          %255 = vst.msk [vmem:[#allocation2 + $0x88] sm:$0xff] %vm237, 0.0
          %256 = vst.msk [vmem:[#allocation2 + $0x90] sm:$0xff] %vm237, 0.0
          %257 = vst.msk [vmem:[#allocation2 + $0x98] sm:$0xff] %vm237, 0.0
          %258 = vst.msk [vmem:[#allocation2 + $0xa0] sm:$0xff] %vm237, 0.0
          %259 = vst.msk [vmem:[#allocation2 + $0xa8] sm:$0xff] %vm237, 0.0
          %260 = vst.msk [vmem:[#allocation2 + $0xb0] sm:$0xff] %vm237, 0.0
          %261 = vst.msk [vmem:[#allocation2 + $0xb8] sm:$0xff] %vm237, 0.0
          %262 = vst.msk [vmem:[#allocation2 + $0xc0] sm:$0xff] %vm237, 0.0
          %263 = vst.msk [vmem:[#allocation2 + $0xc8] sm:$0xff] %vm237, 0.0
          %264 = vst.msk [vmem:[#allocation2 + $0xd0] sm:$0xff] %vm237, 0.0
          %265 = vst.msk [vmem:[#allocation2 + $0xd8] sm:$0xff] %vm237, 0.0
          %266 = vst.msk [vmem:[#allocation2 + $0xe0] sm:$0xff] %vm237, 0.0
          %267 = vst.msk [vmem:[#allocation2 + $0xe8] sm:$0xff] %vm237, 0.0
          %268 = vst.msk [vmem:[#allocation2 + $0xf0] sm:$0xff] %vm237, 0.0
          %269 = vst.msk [vmem:[#allocation2 + $0xf8] sm:$0xff] %vm237, 0.0
        $region40: #{tpu_custom_call.1} parent=27 // pred_fallthru
          _
        %v270 = vld [vmem:[%s171] sm:$0xff]
        %v271 = vld [vmem:[%s171 + $0x8] sm:$0xff]
        %v272 = vld [vmem:[%s171 + $0x10] sm:$0xff]
        %v273 = vld [vmem:[%s171 + $0x18] sm:$0xff]
        %v274 = vld [vmem:[%s171 + $0x20] sm:$0xff]
        %v275 = vld [vmem:[%s171 + $0x28] sm:$0xff]
        %v276 = vld [vmem:[%s171 + $0x30] sm:$0xff]
        %v277 = vld [vmem:[%s171 + $0x38] sm:$0xff]
        %v278 = vld [vmem:[%s171 + $0x40] sm:$0xff]
        %v279 = vld [vmem:[%s171 + $0x48] sm:$0xff]
        %v280 = vld [vmem:[%s171 + $0x50] sm:$0xff]
        %v281 = vld [vmem:[%s171 + $0x58] sm:$0xff]
        %v282 = vld [vmem:[%s171 + $0x60] sm:$0xff]
        %v283 = vld [vmem:[%s171 + $0x68] sm:$0xff]
        %v284 = vld [vmem:[%s171 + $0x70] sm:$0xff]
        %v285 = vld [vmem:[%s171 + $0x78] sm:$0xff]
        %v286 = vunpack.c.0.s8 %v270
        %v287 = vunpack.c.0.s8 %v271
        %v288 = vunpack.c.1.s8 %v270
        %v289 = vunpack.c.1.s8 %v271
        %v290 = vunpack.c.2.s8 %v270
        %v291 = vunpack.c.2.s8 %v271
        %v292 = vunpack.c.3.s8 %v270
        %v293 = vunpack.c.3.s8 %v271
        %v294 = vunpack.c.0.s8 %v272
        %v295 = vunpack.c.0.s8 %v273
        %v296 = vunpack.c.1.s8 %v272
        %v297 = vunpack.c.1.s8 %v273
        %v298 = vunpack.c.2.s8 %v272
        %v299 = vunpack.c.2.s8 %v273
        %v300 = vunpack.c.3.s8 %v272
        %v301 = vunpack.c.3.s8 %v273
        %v302 = vunpack.c.0.s8 %v274
        %v303 = vunpack.c.0.s8 %v275
        %v304 = vunpack.c.1.s8 %v274
        %v305 = vunpack.c.1.s8 %v275
        %v306 = vunpack.c.2.s8 %v274
        %v307 = vunpack.c.2.s8 %v275
        %v308 = vunpack.c.3.s8 %v274
        %v309 = vunpack.c.3.s8 %v275
        %v310 = vunpack.c.0.s8 %v276
        %v311 = vunpack.c.0.s8 %v277
        %v312 = vunpack.c.1.s8 %v276
        %v313 = vunpack.c.1.s8 %v277
        %v314 = vunpack.c.2.s8 %v276
        %v315 = vunpack.c.2.s8 %v277
        %v316 = vunpack.c.3.s8 %v276
        %v317 = vunpack.c.3.s8 %v277
        %v318 = vunpack.c.0.s8 %v278
        %v319 = vunpack.c.0.s8 %v279
        %v320 = vunpack.c.1.s8 %v278
        %v321 = vunpack.c.1.s8 %v279
        %v322 = vunpack.c.2.s8 %v278
        %v323 = vunpack.c.2.s8 %v279
        %v324 = vunpack.c.3.s8 %v278
        %v325 = vunpack.c.3.s8 %v279
        %v326 = vunpack.c.0.s8 %v280
        %v327 = vunpack.c.0.s8 %v281
        %v328 = vunpack.c.1.s8 %v280
        %v329 = vunpack.c.1.s8 %v281
        %v330 = vunpack.c.2.s8 %v280
        %v331 = vunpack.c.2.s8 %v281
        %v332 = vunpack.c.3.s8 %v280
        %v333 = vunpack.c.3.s8 %v281
        %v334 = vunpack.c.0.s8 %v282
        %v335 = vunpack.c.0.s8 %v283
        %v336 = vunpack.c.1.s8 %v282
        %v337 = vunpack.c.1.s8 %v283
        %v338 = vunpack.c.2.s8 %v282
        %v339 = vunpack.c.2.s8 %v283
        %v340 = vunpack.c.3.s8 %v282
        %v341 = vunpack.c.3.s8 %v283
        %v342 = vunpack.c.0.s8 %v284
        %v343 = vunpack.c.0.s8 %v285
        %v344 = vunpack.c.1.s8 %v284
        %v345 = vunpack.c.1.s8 %v285
        %v346 = vunpack.c.2.s8 %v284
        %v347 = vunpack.c.2.s8 %v285
        %v348 = vunpack.c.3.s8 %v284
        %v349 = vunpack.c.3.s8 %v285
        %v350 = vcvt.s32.f32 %v286
        %v351 = vcvt.s32.f32 %v287
        %v352 = vcvt.s32.f32 %v288
        %v353 = vcvt.s32.f32 %v289
        %v354 = vcvt.s32.f32 %v290
        %v355 = vcvt.s32.f32 %v291
        %v356 = vcvt.s32.f32 %v292
        %v357 = vcvt.s32.f32 %v293
        %v358 = vcvt.s32.f32 %v294
        %v359 = vcvt.s32.f32 %v295
        %v360 = vcvt.s32.f32 %v296
        %v361 = vcvt.s32.f32 %v297
        %v362 = vcvt.s32.f32 %v298
        %v363 = vcvt.s32.f32 %v299
        %v364 = vcvt.s32.f32 %v300
        %v365 = vcvt.s32.f32 %v301
        %v366 = vcvt.s32.f32 %v302
        %v367 = vcvt.s32.f32 %v303
        %v368 = vcvt.s32.f32 %v304
        %v369 = vcvt.s32.f32 %v305
        %v370 = vcvt.s32.f32 %v306
        %v371 = vcvt.s32.f32 %v307
        %v372 = vcvt.s32.f32 %v308
        %v373 = vcvt.s32.f32 %v309
        %v374 = vcvt.s32.f32 %v310
        %v375 = vcvt.s32.f32 %v311
        %v376 = vcvt.s32.f32 %v312
        %v377 = vcvt.s32.f32 %v313
        %v378 = vcvt.s32.f32 %v314
        %v379 = vcvt.s32.f32 %v315
        %v380 = vcvt.s32.f32 %v316
        %v381 = vcvt.s32.f32 %v317
        %v382 = vcvt.s32.f32 %v318
        %v383 = vcvt.s32.f32 %v319
        %v384 = vcvt.s32.f32 %v320
        %v385 = vcvt.s32.f32 %v321
        %v386 = vcvt.s32.f32 %v322
        %v387 = vcvt.s32.f32 %v323
        %v388 = vcvt.s32.f32 %v324
        %v389 = vcvt.s32.f32 %v325
        %v390 = vcvt.s32.f32 %v326
        %v391 = vcvt.s32.f32 %v327
        %v392 = vcvt.s32.f32 %v328
        %v393 = vcvt.s32.f32 %v329
        %v394 = vcvt.s32.f32 %v330
        %v395 = vcvt.s32.f32 %v331
        %v396 = vcvt.s32.f32 %v332
        %v397 = vcvt.s32.f32 %v333
        %v398 = vcvt.s32.f32 %v334
        %v399 = vcvt.s32.f32 %v335
        %v400 = vcvt.s32.f32 %v336
        %v401 = vcvt.s32.f32 %v337
        %v402 = vcvt.s32.f32 %v338
        %v403 = vcvt.s32.f32 %v339
        %v404 = vcvt.s32.f32 %v340
        %v405 = vcvt.s32.f32 %v341
        %v406 = vcvt.s32.f32 %v342
        %v407 = vcvt.s32.f32 %v343
        %v408 = vcvt.s32.f32 %v344
        %v409 = vcvt.s32.f32 %v345
        %v410 = vcvt.s32.f32 %v346
        %v411 = vcvt.s32.f32 %v347
        %v412 = vcvt.s32.f32 %v348
        %v413 = vcvt.s32.f32 %v349
        %v414 = vpack.c.bf16 %v352, %v350
        %v415 = vpack.c.bf16 %v353, %v351
        %v416 = vpack.c.bf16 %v356, %v354
        %v417 = vpack.c.bf16 %v357, %v355
        %v418 = vpack.c.bf16 %v360, %v358
        %v419 = vpack.c.bf16 %v361, %v359
        %v420 = vpack.c.bf16 %v364, %v362
        %v421 = vpack.c.bf16 %v365, %v363
        %v422 = vpack.c.bf16 %v368, %v366
        %v423 = vpack.c.bf16 %v369, %v367
        %v424 = vpack.c.bf16 %v372, %v370
        %v425 = vpack.c.bf16 %v373, %v371
        %v426 = vpack.c.bf16 %v376, %v374
        %v427 = vpack.c.bf16 %v377, %v375
        %v428 = vpack.c.bf16 %v380, %v378
        %v429 = vpack.c.bf16 %v381, %v379
        %v430 = vpack.c.bf16 %v384, %v382
        %v431 = vpack.c.bf16 %v385, %v383
        %v432 = vpack.c.bf16 %v388, %v386
        %v433 = vpack.c.bf16 %v389, %v387
        %v434 = vpack.c.bf16 %v392, %v390
        %v435 = vpack.c.bf16 %v393, %v391
        %v436 = vpack.c.bf16 %v396, %v394
        %v437 = vpack.c.bf16 %v397, %v395
        %v438 = vpack.c.bf16 %v400, %v398
        %v439 = vpack.c.bf16 %v401, %v399
        %v440 = vpack.c.bf16 %v404, %v402
        %v441 = vpack.c.bf16 %v405, %v403
        %v442 = vpack.c.bf16 %v408, %v406
        %v443 = vpack.c.bf16 %v409, %v407
        %v444 = vpack.c.bf16 %v412, %v410
        %v445 = vpack.c.bf16 %v413, %v411
        %v446 = vld [vmem:[#allocation2] sm:$0xff]
        %v447 = vld [vmem:[#allocation2 + $0x8] sm:$0xff]
        %v448 = vld [vmem:[#allocation2 + $0x10] sm:$0xff]
        %v449 = vld [vmem:[#allocation2 + $0x18] sm:$0xff]
        %v450 = vld [vmem:[#allocation2 + $0x20] sm:$0xff]
        %v451 = vld [vmem:[#allocation2 + $0x28] sm:$0xff]
        %v452 = vld [vmem:[#allocation2 + $0x30] sm:$0xff]
        %v453 = vld [vmem:[#allocation2 + $0x38] sm:$0xff]
        %v454 = vld [vmem:[#allocation2 + $0x40] sm:$0xff]
        %v455 = vld [vmem:[#allocation2 + $0x48] sm:$0xff]
        %v456 = vld [vmem:[#allocation2 + $0x50] sm:$0xff]
        %v457 = vld [vmem:[#allocation2 + $0x58] sm:$0xff]
        %v458 = vld [vmem:[#allocation2 + $0x60] sm:$0xff]
        %v459 = vld [vmem:[#allocation2 + $0x68] sm:$0xff]
        %v460 = vld [vmem:[#allocation2 + $0x70] sm:$0xff]
        %v461 = vld [vmem:[#allocation2 + $0x78] sm:$0xff]
        %v462 = vld [vmem:[#allocation2 + $0x80] sm:$0xff]
        %v463 = vld [vmem:[#allocation2 + $0x88] sm:$0xff]
        %v464 = vld [vmem:[#allocation2 + $0x90] sm:$0xff]
        %v465 = vld [vmem:[#allocation2 + $0x98] sm:$0xff]
        %v466 = vld [vmem:[#allocation2 + $0xa0] sm:$0xff]
        %v467 = vld [vmem:[#allocation2 + $0xa8] sm:$0xff]
        %v468 = vld [vmem:[#allocation2 + $0xb0] sm:$0xff]
        %v469 = vld [vmem:[#allocation2 + $0xb8] sm:$0xff]
        %v470 = vld [vmem:[#allocation2 + $0xc0] sm:$0xff]
        %v471 = vld [vmem:[#allocation2 + $0xc8] sm:$0xff]
        %v472 = vld [vmem:[#allocation2 + $0xd0] sm:$0xff]
        %v473 = vld [vmem:[#allocation2 + $0xd8] sm:$0xff]
        %v474 = vld [vmem:[#allocation2 + $0xe0] sm:$0xff]
        %v475 = vld [vmem:[#allocation2 + $0xe8] sm:$0xff]
        %v476 = vld [vmem:[#allocation2 + $0xf0] sm:$0xff]
        %v477 = vld [vmem:[#allocation2 + $0xf8] sm:$0xff]
        %v478 = vunpack.c.l.bf16 %v414
        %v479 = vunpack.c.l.bf16 %v415
        %v480 = vunpack.c.h.bf16 %v414
        %v481 = vunpack.c.h.bf16 %v415
        %v482 = vunpack.c.l.bf16 %v416
        %v483 = vunpack.c.l.bf16 %v417
        %v484 = vunpack.c.h.bf16 %v416
        %v485 = vunpack.c.h.bf16 %v417
        %v486 = vunpack.c.l.bf16 %v418
        %v487 = vunpack.c.l.bf16 %v419
        %v488 = vunpack.c.h.bf16 %v418
        %v489 = vunpack.c.h.bf16 %v419
        %v490 = vunpack.c.l.bf16 %v420
        %v491 = vunpack.c.l.bf16 %v421
        %v492 = vunpack.c.h.bf16 %v420
        %v493 = vunpack.c.h.bf16 %v421
        %v494 = vunpack.c.l.bf16 %v422
        %v495 = vunpack.c.l.bf16 %v423
        %v496 = vunpack.c.h.bf16 %v422
        %v497 = vunpack.c.h.bf16 %v423
        %v498 = vunpack.c.l.bf16 %v424
        %v499 = vunpack.c.l.bf16 %v425
        %v500 = vunpack.c.h.bf16 %v424
        %v501 = vunpack.c.h.bf16 %v425
        %v502 = vunpack.c.l.bf16 %v426
        %v503 = vunpack.c.l.bf16 %v427
        %v504 = vunpack.c.h.bf16 %v426
        %v505 = vunpack.c.h.bf16 %v427
        %v506 = vunpack.c.l.bf16 %v428
        %v507 = vunpack.c.l.bf16 %v429
        %v508 = vunpack.c.h.bf16 %v428
        %v509 = vunpack.c.h.bf16 %v429
        %v510 = vunpack.c.l.bf16 %v430
        %v511 = vunpack.c.l.bf16 %v431
        %v512 = vunpack.c.h.bf16 %v430
        %v513 = vunpack.c.h.bf16 %v431
        %v514 = vunpack.c.l.bf16 %v432
        %v515 = vunpack.c.l.bf16 %v433
        %v516 = vunpack.c.h.bf16 %v432
        %v517 = vunpack.c.h.bf16 %v433
        %v518 = vunpack.c.l.bf16 %v434
        %v519 = vunpack.c.l.bf16 %v435
        %v520 = vunpack.c.h.bf16 %v434
        %v521 = vunpack.c.h.bf16 %v435
        %v522 = vunpack.c.l.bf16 %v436
        %v523 = vunpack.c.l.bf16 %v437
        %v524 = vunpack.c.h.bf16 %v436
        %v525 = vunpack.c.h.bf16 %v437
        %v526 = vunpack.c.l.bf16 %v438
        %v527 = vunpack.c.l.bf16 %v439
        %v528 = vunpack.c.h.bf16 %v438
        %v529 = vunpack.c.h.bf16 %v439
        %v530 = vunpack.c.l.bf16 %v440
        %v531 = vunpack.c.l.bf16 %v441
        %v532 = vunpack.c.h.bf16 %v440
        %v533 = vunpack.c.h.bf16 %v441
        %v534 = vunpack.c.l.bf16 %v442
        %v535 = vunpack.c.l.bf16 %v443
        %v536 = vunpack.c.h.bf16 %v442
        %v537 = vunpack.c.h.bf16 %v443
        %v538 = vunpack.c.l.bf16 %v444
        %v539 = vunpack.c.l.bf16 %v445
        %v540 = vunpack.c.h.bf16 %v444
        %v541 = vunpack.c.h.bf16 %v445
        %v542 = vadd.f32 %v478, %v479
        %543 = vadd.xlane.f32.xlu0 %v542
        %v544 = vpop.xlane.xlu0 %543
        %v545 = vadd.f32 %v480, %v481
        %546 = vadd.xlane.f32.xlu0 %v545
        %v547 = vpop.xlane.xlu0 %546
        %v548 = vadd.f32 %v482, %v483
        %549 = vadd.xlane.f32.xlu0 %v548
        %v550 = vpop.xlane.xlu0 %549
        %v551 = vadd.f32 %v484, %v485
        %552 = vadd.xlane.f32.xlu0 %v551
        %v553 = vpop.xlane.xlu0 %552
        %v554 = vadd.f32 %v486, %v487
        %555 = vadd.xlane.f32.xlu0 %v554
        %v556 = vpop.xlane.xlu0 %555
        %v557 = vadd.f32 %v488, %v489
        %558 = vadd.xlane.f32.xlu0 %v557
        %v559 = vpop.xlane.xlu0 %558
        %v560 = vadd.f32 %v490, %v491
        %561 = vadd.xlane.f32.xlu0 %v560
        %v562 = vpop.xlane.xlu0 %561
        %v563 = vadd.f32 %v492, %v493
        %564 = vadd.xlane.f32.xlu0 %v563
        %v565 = vpop.xlane.xlu0 %564
        %v566 = vadd.f32 %v494, %v495
        %567 = vadd.xlane.f32.xlu0 %v566
        %v568 = vpop.xlane.xlu0 %567
        %v569 = vadd.f32 %v496, %v497
        %570 = vadd.xlane.f32.xlu0 %v569
        %v571 = vpop.xlane.xlu0 %570
        %v572 = vadd.f32 %v498, %v499
        %573 = vadd.xlane.f32.xlu0 %v572
        %v574 = vpop.xlane.xlu0 %573
        %v575 = vadd.f32 %v500, %v501
        %576 = vadd.xlane.f32.xlu0 %v575
        %v577 = vpop.xlane.xlu0 %576
        %v578 = vadd.f32 %v502, %v503
        %579 = vadd.xlane.f32.xlu0 %v578
        %v580 = vpop.xlane.xlu0 %579
        %v581 = vadd.f32 %v504, %v505
        %582 = vadd.xlane.f32.xlu0 %v581
        %v583 = vpop.xlane.xlu0 %582
        %v584 = vadd.f32 %v506, %v507
        %585 = vadd.xlane.f32.xlu0 %v584
        %v586 = vpop.xlane.xlu0 %585
        %v587 = vadd.f32 %v508, %v509
        %588 = vadd.xlane.f32.xlu0 %v587
        %v589 = vpop.xlane.xlu0 %588
        %v590 = vadd.f32 %v510, %v511
        %591 = vadd.xlane.f32.xlu0 %v590
        %v592 = vpop.xlane.xlu0 %591
        %v593 = vadd.f32 %v512, %v513
        %594 = vadd.xlane.f32.xlu0 %v593
        %v595 = vpop.xlane.xlu0 %594
        %v596 = vadd.f32 %v514, %v515
        %597 = vadd.xlane.f32.xlu0 %v596
        %v598 = vpop.xlane.xlu0 %597
        %v599 = vadd.f32 %v516, %v517
        %600 = vadd.xlane.f32.xlu0 %v599
        %v601 = vpop.xlane.xlu0 %600
        %v602 = vadd.f32 %v518, %v519
        %603 = vadd.xlane.f32.xlu0 %v602
        %v604 = vpop.xlane.xlu0 %603
        %v605 = vadd.f32 %v520, %v521
        %606 = vadd.xlane.f32.xlu0 %v605
        %v607 = vpop.xlane.xlu0 %606
        %v608 = vadd.f32 %v522, %v523
        %609 = vadd.xlane.f32.xlu0 %v608
        %v610 = vpop.xlane.xlu0 %609
        %v611 = vadd.f32 %v524, %v525
        %612 = vadd.xlane.f32.xlu0 %v611
        %v613 = vpop.xlane.xlu0 %612
        %v614 = vadd.f32 %v526, %v527
        %615 = vadd.xlane.f32.xlu0 %v614
        %v616 = vpop.xlane.xlu0 %615
        %v617 = vadd.f32 %v528, %v529
        %618 = vadd.xlane.f32.xlu0 %v617
        %v619 = vpop.xlane.xlu0 %618
        %v620 = vadd.f32 %v530, %v531
        %621 = vadd.xlane.f32.xlu0 %v620
        %v622 = vpop.xlane.xlu0 %621
        %v623 = vadd.f32 %v532, %v533
        %624 = vadd.xlane.f32.xlu0 %v623
        %v625 = vpop.xlane.xlu0 %624
        %v626 = vadd.f32 %v534, %v535
        %627 = vadd.xlane.f32.xlu0 %v626
        %v628 = vpop.xlane.xlu0 %627
        %v629 = vadd.f32 %v536, %v537
        %630 = vadd.xlane.f32.xlu0 %v629
        %v631 = vpop.xlane.xlu0 %630
        %v632 = vadd.f32 %v538, %v539
        %633 = vadd.xlane.f32.xlu0 %v632
        %v634 = vpop.xlane.xlu0 %633
        %v635 = vadd.f32 %v540, %v541
        %636 = vadd.xlane.f32.xlu0 %v635
        %v637 = vpop.xlane.xlu0 %636
        %v638 = vadd.f32 %v446, %v544
        %v639 = vadd.f32 %v447, %v547
        %v640 = vadd.f32 %v448, %v550
        %v641 = vadd.f32 %v449, %v553
        %v642 = vadd.f32 %v450, %v556
        %v643 = vadd.f32 %v451, %v559
        %v644 = vadd.f32 %v452, %v562
        %v645 = vadd.f32 %v453, %v565
        %v646 = vadd.f32 %v454, %v568
        %v647 = vadd.f32 %v455, %v571
        %v648 = vadd.f32 %v456, %v574
        %v649 = vadd.f32 %v457, %v577
        %v650 = vadd.f32 %v458, %v580
        %v651 = vadd.f32 %v459, %v583
        %v652 = vadd.f32 %v460, %v586
        %v653 = vadd.f32 %v461, %v589
        %v654 = vadd.f32 %v462, %v592
        %v655 = vadd.f32 %v463, %v595
        %v656 = vadd.f32 %v464, %v598
        %v657 = vadd.f32 %v465, %v601
        %v658 = vadd.f32 %v466, %v604
        %v659 = vadd.f32 %v467, %v607
        %v660 = vadd.f32 %v468, %v610
        %v661 = vadd.f32 %v469, %v613
        %v662 = vadd.f32 %v470, %v616
        %v663 = vadd.f32 %v471, %v619
        %v664 = vadd.f32 %v472, %v622
        %v665 = vadd.f32 %v473, %v625
        %v666 = vadd.f32 %v474, %v628
        %v667 = vadd.f32 %v475, %v631
        %v668 = vadd.f32 %v476, %v634
        %v669 = vadd.f32 %v477, %v637
        %vm670 = vcmask 7168
        %671 = vst.msk [vmem:[#allocation2] sm:$0xff] %vm670, %v638
        %672 = vst.msk [vmem:[#allocation2 + $0x8] sm:$0xff] %vm670, %v639
        %673 = vst.msk [vmem:[#allocation2 + $0x10] sm:$0xff] %vm670, %v640
        %674 = vst.msk [vmem:[#allocation2 + $0x18] sm:$0xff] %vm670, %v641
        %675 = vst.msk [vmem:[#allocation2 + $0x20] sm:$0xff] %vm670, %v642
        %676 = vst.msk [vmem:[#allocation2 + $0x28] sm:$0xff] %vm670, %v643
        %677 = vst.msk [vmem:[#allocation2 + $0x30] sm:$0xff] %vm670, %v644
        %678 = vst.msk [vmem:[#allocation2 + $0x38] sm:$0xff] %vm670, %v645
        %679 = vst.msk [vmem:[#allocation2 + $0x40] sm:$0xff] %vm670, %v646
        %680 = vst.msk [vmem:[#allocation2 + $0x48] sm:$0xff] %vm670, %v647
        %681 = vst.msk [vmem:[#allocation2 + $0x50] sm:$0xff] %vm670, %v648
        %682 = vst.msk [vmem:[#allocation2 + $0x58] sm:$0xff] %vm670, %v649
        %683 = vst.msk [vmem:[#allocation2 + $0x60] sm:$0xff] %vm670, %v650
        %684 = vst.msk [vmem:[#allocation2 + $0x68] sm:$0xff] %vm670, %v651
        %685 = vst.msk [vmem:[#allocation2 + $0x70] sm:$0xff] %vm670, %v652
        %686 = vst.msk [vmem:[#allocation2 + $0x78] sm:$0xff] %vm670, %v653
        %687 = vst.msk [vmem:[#allocation2 + $0x80] sm:$0xff] %vm670, %v654
        %688 = vst.msk [vmem:[#allocation2 + $0x88] sm:$0xff] %vm670, %v655
        %689 = vst.msk [vmem:[#allocation2 + $0x90] sm:$0xff] %vm670, %v656
        %690 = vst.msk [vmem:[#allocation2 + $0x98] sm:$0xff] %vm670, %v657
        %691 = vst.msk [vmem:[#allocation2 + $0xa0] sm:$0xff] %vm670, %v658
        %692 = vst.msk [vmem:[#allocation2 + $0xa8] sm:$0xff] %vm670, %v659
        %693 = vst.msk [vmem:[#allocation2 + $0xb0] sm:$0xff] %vm670, %v660
        %694 = vst.msk [vmem:[#allocation2 + $0xb8] sm:$0xff] %vm670, %v661
        %695 = vst.msk [vmem:[#allocation2 + $0xc0] sm:$0xff] %vm670, %v662
        %696 = vst.msk [vmem:[#allocation2 + $0xc8] sm:$0xff] %vm670, %v663
        %697 = vst.msk [vmem:[#allocation2 + $0xd0] sm:$0xff] %vm670, %v664
        %698 = vst.msk [vmem:[#allocation2 + $0xd8] sm:$0xff] %vm670, %v665
        %699 = vst.msk [vmem:[#allocation2 + $0xe0] sm:$0xff] %vm670, %v666
        %700 = vst.msk [vmem:[#allocation2 + $0xe8] sm:$0xff] %vm670, %v667
        %701 = vst.msk [vmem:[#allocation2 + $0xf0] sm:$0xff] %vm670, %v668
        %702 = vst.msk [vmem:[#allocation2 + $0xf8] sm:$0xff] %vm670, %v669
        %s703 = smul.u32 %s25, 256
        %s704 = sshra.s32 %s703, 3
        %s705 = sand.u32 %s703, 7
        %s706 = smul.addr %s704, 4
        %s707 = scalar_lea.vmem [#allocation6], %s706
        %v708 = vld [vmem:[%s707] sm:$0xf]
        %v709 = vld [vmem:[%s707 + $0x4] sm:$0xf]
        %v710 = vld [vmem:[%s707 + $0x8] sm:$0xf]
        %v711 = vld [vmem:[%s707 + $0xc] sm:$0xf]
        %v712 = vld [vmem:[%s707 + $0x10] sm:$0xf]
        %v713 = vld [vmem:[%s707 + $0x14] sm:$0xf]
        %v714 = vld [vmem:[%s707 + $0x18] sm:$0xf]
        %v715 = vld [vmem:[%s707 + $0x1c] sm:$0xf]
        %v716 = vld [vmem:[%s707 + $0x20] sm:$0xf]
        %v717 = vld [vmem:[%s707 + $0x24] sm:$0xf]
        %v718 = vld [vmem:[%s707 + $0x28] sm:$0xf]
        %v719 = vld [vmem:[%s707 + $0x2c] sm:$0xf]
        %v720 = vld [vmem:[%s707 + $0x30] sm:$0xf]
        %v721 = vld [vmem:[%s707 + $0x34] sm:$0xf]
        %v722 = vld [vmem:[%s707 + $0x38] sm:$0xf]
        %v723 = vld [vmem:[%s707 + $0x3c] sm:$0xf]
        %v724 = vld [vmem:[%s707 + $0x40] sm:$0xf]
        %v725 = vld [vmem:[%s707 + $0x44] sm:$0xf]
        %v726 = vld [vmem:[%s707 + $0x48] sm:$0xf]
        %v727 = vld [vmem:[%s707 + $0x4c] sm:$0xf]
        %v728 = vld [vmem:[%s707 + $0x50] sm:$0xf]
        %v729 = vld [vmem:[%s707 + $0x54] sm:$0xf]
        %v730 = vld [vmem:[%s707 + $0x58] sm:$0xf]
        %v731 = vld [vmem:[%s707 + $0x5c] sm:$0xf]
        %v732 = vld [vmem:[%s707 + $0x60] sm:$0xf]
        %v733 = vld [vmem:[%s707 + $0x64] sm:$0xf]
        %v734 = vld [vmem:[%s707 + $0x68] sm:$0xf]
        %v735 = vld [vmem:[%s707 + $0x6c] sm:$0xf]
        %v736 = vld [vmem:[%s707 + $0x70] sm:$0xf]
        %v737 = vld [vmem:[%s707 + $0x74] sm:$0xf]
        %v738 = vld [vmem:[%s707 + $0x78] sm:$0xf]
        %v739 = vld [vmem:[%s707 + $0x7c] sm:$0xf]
        %v740 = vld [vmem:[%s197] sm:$0xff]
        %v741 = vld [vmem:[%s197 + $0x8] sm:$0xff]
        %v742 = vld [vmem:[%s197 + $0x10] sm:$0xff]
        %v743 = vld [vmem:[%s197 + $0x18] sm:$0xff]
        %v744 = vld [vmem:[%s197 + $0x20] sm:$0xff]
        %v745 = vld [vmem:[%s197 + $0x28] sm:$0xff]
        %v746 = vld [vmem:[%s197 + $0x30] sm:$0xff]
        %v747 = vld [vmem:[%s197 + $0x38] sm:$0xff]
        %v748 = vld [vmem:[%s197 + $0x40] sm:$0xff]
        %v749 = vld [vmem:[%s197 + $0x48] sm:$0xff]
        %v750 = vld [vmem:[%s197 + $0x50] sm:$0xff]
        %v751 = vld [vmem:[%s197 + $0x58] sm:$0xff]
        %v752 = vld [vmem:[%s197 + $0x60] sm:$0xff]
        %v753 = vld [vmem:[%s197 + $0x68] sm:$0xff]
        %v754 = vld [vmem:[%s197 + $0x70] sm:$0xff]
        %v755 = vld [vmem:[%s197 + $0x78] sm:$0xff]
        %v756 = vld [vmem:[%s197 + $0x80] sm:$0xff]
        %v757 = vld [vmem:[%s197 + $0x88] sm:$0xff]
        %v758 = vld [vmem:[%s197 + $0x90] sm:$0xff]
        %v759 = vld [vmem:[%s197 + $0x98] sm:$0xff]
        %v760 = vld [vmem:[%s197 + $0xa0] sm:$0xff]
        %v761 = vld [vmem:[%s197 + $0xa8] sm:$0xff]
        %v762 = vld [vmem:[%s197 + $0xb0] sm:$0xff]
        %v763 = vld [vmem:[%s197 + $0xb8] sm:$0xff]
        %v764 = vld [vmem:[%s197 + $0xc0] sm:$0xff]
        %v765 = vld [vmem:[%s197 + $0xc8] sm:$0xff]
        %v766 = vld [vmem:[%s197 + $0xd0] sm:$0xff]
        %v767 = vld [vmem:[%s197 + $0xd8] sm:$0xff]
        %v768 = vld [vmem:[%s197 + $0xe0] sm:$0xff]
        %v769 = vld [vmem:[%s197 + $0xe8] sm:$0xff]
        %v770 = vld [vmem:[%s197 + $0xf0] sm:$0xff]
        %v771 = vld [vmem:[%s197 + $0xf8] sm:$0xff]
        %v804 = vunpack.c.l.b16 %v708
        %v805 = vunpack.c.l.b16 %v709
        %v806 = vunpack.c.l.b16 %v710
        %v807 = vunpack.c.l.b16 %v711
        %v808 = vunpack.c.l.b16 %v712
        %v809 = vunpack.c.l.b16 %v713
        %v810 = vunpack.c.l.b16 %v714
        %v811 = vunpack.c.l.b16 %v715
        %v812 = vunpack.c.l.b16 %v716
        %v813 = vunpack.c.l.b16 %v717
        %v814 = vunpack.c.l.b16 %v718
        %v815 = vunpack.c.l.b16 %v719
        %v816 = vunpack.c.l.b16 %v720
        %v817 = vunpack.c.l.b16 %v721
        %v818 = vunpack.c.l.b16 %v722
        %v819 = vunpack.c.l.b16 %v723
        %v820 = vunpack.c.l.b16 %v724
        %v821 = vunpack.c.l.b16 %v725
        %v822 = vunpack.c.l.b16 %v726
        %v823 = vunpack.c.l.b16 %v727
        %v824 = vunpack.c.l.b16 %v728
        %v825 = vunpack.c.l.b16 %v729
        %v826 = vunpack.c.l.b16 %v730
        %v827 = vunpack.c.l.b16 %v731
        %v828 = vunpack.c.l.b16 %v732
        %v829 = vunpack.c.l.b16 %v733
        %v830 = vunpack.c.l.b16 %v734
        %v831 = vunpack.c.l.b16 %v735
        %v832 = vunpack.c.l.b16 %v736
        %v833 = vunpack.c.l.b16 %v737
        %v834 = vunpack.c.l.b16 %v738
        %v835 = vunpack.c.l.b16 %v739
        %v836 = vpack.c.b16 %v805, %v804
        %v837 = vpack.c.b16 %v807, %v806
        %v838 = vpack.c.b16 %v809, %v808
        %v839 = vpack.c.b16 %v811, %v810
        %v840 = vpack.c.b16 %v813, %v812
        %v841 = vpack.c.b16 %v815, %v814
        %v842 = vpack.c.b16 %v817, %v816
        %v843 = vpack.c.b16 %v819, %v818
        %v844 = vpack.c.b16 %v821, %v820
        %v845 = vpack.c.b16 %v823, %v822
        %v846 = vpack.c.b16 %v825, %v824
        %v847 = vpack.c.b16 %v827, %v826
        %v848 = vpack.c.b16 %v829, %v828
        %v849 = vpack.c.b16 %v831, %v830
        %v850 = vpack.c.b16 %v833, %v832
        %v851 = vpack.c.b16 %v835, %v834
        %868 = vmatpush.bf16.msra.mxu0 %v843
        %869 = vmatpush.bf16.msra.mxu0 %v842
        %870 = vmatpush.bf16.msra.mxu0 %v841
        %871 = vmatpush.bf16.msra.mxu0 %v840
        %872 = vmatpush.bf16.msra.mxu0 %v839
        %873 = vmatpush.bf16.msra.mxu0 %v838
        %874 = vmatpush.bf16.msra.mxu0 %v837
        %875 = vmatpush.bf16.msra.mxu0 %v836
        %876 = vmatmul.bf16.gmra.mxu0 %v414
        %v877 = vpop.f32.mrf.mxu0
        %v878 = vadd.f32 0.0, %v877
        %v879 = vpop.f32.mrf.mxu0
        %v880 = vadd.f32 0.0, %v879
        %881 = vmatmul.bf16.gmra.mxu0 %v416
        %v882 = vpop.f32.mrf.mxu0
        %v883 = vadd.f32 0.0, %v882
        %v884 = vpop.f32.mrf.mxu0
        %v885 = vadd.f32 0.0, %v884
        %886 = vmatmul.bf16.gmra.mxu0 %v418
        %v887 = vpop.f32.mrf.mxu0
        %v888 = vadd.f32 0.0, %v887
        %v889 = vpop.f32.mrf.mxu0
        %v890 = vadd.f32 0.0, %v889
        %891 = vmatmul.bf16.gmra.mxu0 %v420
        %v892 = vpop.f32.mrf.mxu0
        %v893 = vadd.f32 0.0, %v892
        %v894 = vpop.f32.mrf.mxu0
        %v895 = vadd.f32 0.0, %v894
        %896 = vmatmul.bf16.gmra.mxu0 %v422
        %v897 = vpop.f32.mrf.mxu0
        %v898 = vadd.f32 0.0, %v897
        %v899 = vpop.f32.mrf.mxu0
        %v900 = vadd.f32 0.0, %v899
        %901 = vmatmul.bf16.gmra.mxu0 %v424
        %v902 = vpop.f32.mrf.mxu0
        %v903 = vadd.f32 0.0, %v902
        %v904 = vpop.f32.mrf.mxu0
        %v905 = vadd.f32 0.0, %v904
        %906 = vmatmul.bf16.gmra.mxu0 %v426
        %v907 = vpop.f32.mrf.mxu0
        %v908 = vadd.f32 0.0, %v907
        %v909 = vpop.f32.mrf.mxu0
        %v910 = vadd.f32 0.0, %v909
        %911 = vmatmul.bf16.gmra.mxu0 %v428
        %v912 = vpop.f32.mrf.mxu0
        %v913 = vadd.f32 0.0, %v912
        %v914 = vpop.f32.mrf.mxu0
        %v915 = vadd.f32 0.0, %v914
        %916 = vmatmul.bf16.gmra.mxu0 %v430
        %v917 = vpop.f32.mrf.mxu0
        %v918 = vadd.f32 0.0, %v917
        %v919 = vpop.f32.mrf.mxu0
        %v920 = vadd.f32 0.0, %v919
        %921 = vmatmul.bf16.gmra.mxu0 %v432
        %v922 = vpop.f32.mrf.mxu0
        %v923 = vadd.f32 0.0, %v922
        %v924 = vpop.f32.mrf.mxu0
        %v925 = vadd.f32 0.0, %v924
        %926 = vmatmul.bf16.gmra.mxu0 %v434
        %v927 = vpop.f32.mrf.mxu0
        %v928 = vadd.f32 0.0, %v927
        %v929 = vpop.f32.mrf.mxu0
        %v930 = vadd.f32 0.0, %v929
        %931 = vmatmul.bf16.gmra.mxu0 %v436
        %v932 = vpop.f32.mrf.mxu0
        %v933 = vadd.f32 0.0, %v932
        %v934 = vpop.f32.mrf.mxu0
        %v935 = vadd.f32 0.0, %v934
        %936 = vmatmul.bf16.gmra.mxu0 %v438
        %v937 = vpop.f32.mrf.mxu0
        %v938 = vadd.f32 0.0, %v937
        %v939 = vpop.f32.mrf.mxu0
        %v940 = vadd.f32 0.0, %v939
        %941 = vmatmul.bf16.gmra.mxu0 %v440
        %v942 = vpop.f32.mrf.mxu0
        %v943 = vadd.f32 0.0, %v942
        %v944 = vpop.f32.mrf.mxu0
        %v945 = vadd.f32 0.0, %v944
        %946 = vmatmul.bf16.gmra.mxu0 %v442
        %v947 = vpop.f32.mrf.mxu0
        %v948 = vadd.f32 0.0, %v947
        %v949 = vpop.f32.mrf.mxu0
        %v950 = vadd.f32 0.0, %v949
        %951 = vmatmul.bf16.gmra.mxu0 %v444
        %v952 = vpop.f32.mrf.mxu0
        %v953 = vadd.f32 0.0, %v952
        %v954 = vpop.f32.mrf.mxu0
        %v955 = vadd.f32 0.0, %v954
        %956 = vdwg.mxu0
        %957 = vmatpush.bf16.msra.mxu0 %v851
        %958 = vmatpush.bf16.msra.mxu0 %v850
        %959 = vmatpush.bf16.msra.mxu0 %v849
        %960 = vmatpush.bf16.msra.mxu0 %v848
        %961 = vmatpush.bf16.msra.mxu0 %v847
        %962 = vmatpush.bf16.msra.mxu0 %v846
        %963 = vmatpush.bf16.msra.mxu0 %v845
        %964 = vmatpush.bf16.msra.mxu0 %v844
        %965 = vmatmul.bf16.gmra.mxu0 %v415
        %v966 = vpop.f32.mrf.mxu0
        %v967 = vadd.f32 %v878, %v966
        %v968 = vpop.f32.mrf.mxu0
        %v969 = vadd.f32 %v880, %v968
        %970 = vmatmul.bf16.gmra.mxu0 %v417
        %v971 = vpop.f32.mrf.mxu0
        %v972 = vadd.f32 %v883, %v971
        %v973 = vpop.f32.mrf.mxu0
        %v974 = vadd.f32 %v885, %v973
        %975 = vmatmul.bf16.gmra.mxu0 %v419
        %v976 = vpop.f32.mrf.mxu0
        %v977 = vadd.f32 %v888, %v976
        %v978 = vpop.f32.mrf.mxu0
        %v979 = vadd.f32 %v890, %v978
        %980 = vmatmul.bf16.gmra.mxu0 %v421
        %v981 = vpop.f32.mrf.mxu0
        %v982 = vadd.f32 %v893, %v981
        %v983 = vpop.f32.mrf.mxu0
        %v984 = vadd.f32 %v895, %v983
        %985 = vmatmul.bf16.gmra.mxu0 %v423
        %v986 = vpop.f32.mrf.mxu0
        %v987 = vadd.f32 %v898, %v986
        %v988 = vpop.f32.mrf.mxu0
        %v989 = vadd.f32 %v900, %v988
        %990 = vmatmul.bf16.gmra.mxu0 %v425
        %v991 = vpop.f32.mrf.mxu0
        %v992 = vadd.f32 %v903, %v991
        %v993 = vpop.f32.mrf.mxu0
        %v994 = vadd.f32 %v905, %v993
        %995 = vmatmul.bf16.gmra.mxu0 %v427
        %v996 = vpop.f32.mrf.mxu0
        %v997 = vadd.f32 %v908, %v996
        %v998 = vpop.f32.mrf.mxu0
        %v999 = vadd.f32 %v910, %v998
        %1000 = vmatmul.bf16.gmra.mxu0 %v429
        %v1001 = vpop.f32.mrf.mxu0
        %v1002 = vadd.f32 %v913, %v1001
        %v1003 = vpop.f32.mrf.mxu0
        %v1004 = vadd.f32 %v915, %v1003
        %1005 = vmatmul.bf16.gmra.mxu0 %v431
        %v1006 = vpop.f32.mrf.mxu0
        %v1007 = vadd.f32 %v918, %v1006
        %v1008 = vpop.f32.mrf.mxu0
        %v1009 = vadd.f32 %v920, %v1008
        %1010 = vmatmul.bf16.gmra.mxu0 %v433
        %v1011 = vpop.f32.mrf.mxu0
        %v1012 = vadd.f32 %v923, %v1011
        %v1013 = vpop.f32.mrf.mxu0
        %v1014 = vadd.f32 %v925, %v1013
        %1015 = vmatmul.bf16.gmra.mxu0 %v435
        %v1016 = vpop.f32.mrf.mxu0
        %v1017 = vadd.f32 %v928, %v1016
        %v1018 = vpop.f32.mrf.mxu0
        %v1019 = vadd.f32 %v930, %v1018
        %1020 = vmatmul.bf16.gmra.mxu0 %v437
        %v1021 = vpop.f32.mrf.mxu0
        %v1022 = vadd.f32 %v933, %v1021
        %v1023 = vpop.f32.mrf.mxu0
        %v1024 = vadd.f32 %v935, %v1023
        %1025 = vmatmul.bf16.gmra.mxu0 %v439
        %v1026 = vpop.f32.mrf.mxu0
        %v1027 = vadd.f32 %v938, %v1026
        %v1028 = vpop.f32.mrf.mxu0
        %v1029 = vadd.f32 %v940, %v1028
        %1030 = vmatmul.bf16.gmra.mxu0 %v441
        %v1031 = vpop.f32.mrf.mxu0
        %v1032 = vadd.f32 %v943, %v1031
        %v1033 = vpop.f32.mrf.mxu0
        %v1034 = vadd.f32 %v945, %v1033
        %1035 = vmatmul.bf16.gmra.mxu0 %v443
        %v1036 = vpop.f32.mrf.mxu0
        %v1037 = vadd.f32 %v948, %v1036
        %v1038 = vpop.f32.mrf.mxu0
        %v1039 = vadd.f32 %v950, %v1038
        %1040 = vmatmul.bf16.gmra.mxu0 %v445
        %v1041 = vpop.f32.mrf.mxu0
        %v1042 = vadd.f32 %v953, %v1041
        %v1043 = vpop.f32.mrf.mxu0
        %v1044 = vadd.f32 %v955, %v1043
        %1045 = vdwg.mxu0
        %v1046 = vadd.f32 %v740, %v967
        %v1047 = vadd.f32 %v741, %v969
        %v1048 = vadd.f32 %v742, %v972
        %v1049 = vadd.f32 %v743, %v974
        %v1050 = vadd.f32 %v744, %v977
        %v1051 = vadd.f32 %v745, %v979
        %v1052 = vadd.f32 %v746, %v982
        %v1053 = vadd.f32 %v747, %v984
        %v1054 = vadd.f32 %v748, %v987
        %v1055 = vadd.f32 %v749, %v989
        %v1056 = vadd.f32 %v750, %v992
        %v1057 = vadd.f32 %v751, %v994
        %v1058 = vadd.f32 %v752, %v997
        %v1059 = vadd.f32 %v753, %v999
        %v1060 = vadd.f32 %v754, %v1002
        %v1061 = vadd.f32 %v755, %v1004
        %v1062 = vadd.f32 %v756, %v1007
        %v1063 = vadd.f32 %v757, %v1009
        %v1064 = vadd.f32 %v758, %v1012
        %v1065 = vadd.f32 %v759, %v1014
        %v1066 = vadd.f32 %v760, %v1017
        %v1067 = vadd.f32 %v761, %v1019
        %v1068 = vadd.f32 %v762, %v1022
        %v1069 = vadd.f32 %v763, %v1024
        %v1070 = vadd.f32 %v764, %v1027
        %v1071 = vadd.f32 %v765, %v1029
        %v1072 = vadd.f32 %v766, %v1032
        %v1073 = vadd.f32 %v767, %v1034
        %v1074 = vadd.f32 %v768, %v1037
        %v1075 = vadd.f32 %v769, %v1039
        %v1076 = vadd.f32 %v770, %v1042
        %v1077 = vadd.f32 %v771, %v1044
        %1078 = vst [vmem:[%s197] sm:$0xff] %v1046
        %1079 = vst [vmem:[%s197 + $0x8] sm:$0xff] %v1047
        %1080 = vst [vmem:[%s197 + $0x10] sm:$0xff] %v1048
        %1081 = vst [vmem:[%s197 + $0x18] sm:$0xff] %v1049
        %1082 = vst [vmem:[%s197 + $0x20] sm:$0xff] %v1050
        %1083 = vst [vmem:[%s197 + $0x28] sm:$0xff] %v1051
        %1084 = vst [vmem:[%s197 + $0x30] sm:$0xff] %v1052
        %1085 = vst [vmem:[%s197 + $0x38] sm:$0xff] %v1053
        %1086 = vst [vmem:[%s197 + $0x40] sm:$0xff] %v1054
        %1087 = vst [vmem:[%s197 + $0x48] sm:$0xff] %v1055
        %1088 = vst [vmem:[%s197 + $0x50] sm:$0xff] %v1056
        %1089 = vst [vmem:[%s197 + $0x58] sm:$0xff] %v1057
        %1090 = vst [vmem:[%s197 + $0x60] sm:$0xff] %v1058
        %1091 = vst [vmem:[%s197 + $0x68] sm:$0xff] %v1059
        %1092 = vst [vmem:[%s197 + $0x70] sm:$0xff] %v1060
        %1093 = vst [vmem:[%s197 + $0x78] sm:$0xff] %v1061
        %1094 = vst [vmem:[%s197 + $0x80] sm:$0xff] %v1062
        %1095 = vst [vmem:[%s197 + $0x88] sm:$0xff] %v1063
        %1096 = vst [vmem:[%s197 + $0x90] sm:$0xff] %v1064
        %1097 = vst [vmem:[%s197 + $0x98] sm:$0xff] %v1065
        %1098 = vst [vmem:[%s197 + $0xa0] sm:$0xff] %v1066
        %1099 = vst [vmem:[%s197 + $0xa8] sm:$0xff] %v1067
        %1100 = vst [vmem:[%s197 + $0xb0] sm:$0xff] %v1068
        %1101 = vst [vmem:[%s197 + $0xb8] sm:$0xff] %v1069
        %1102 = vst [vmem:[%s197 + $0xc0] sm:$0xff] %v1070
        %1103 = vst [vmem:[%s197 + $0xc8] sm:$0xff] %v1071
        %1104 = vst [vmem:[%s197 + $0xd0] sm:$0xff] %v1072
        %1105 = vst [vmem:[%s197 + $0xd8] sm:$0xff] %v1073
        %1106 = vst [vmem:[%s197 + $0xe0] sm:$0xff] %v1074
        %1107 = vst [vmem:[%s197 + $0xe8] sm:$0xff] %v1075
        %1108 = vst [vmem:[%s197 + $0xf0] sm:$0xff] %v1076
        %1109 = vst [vmem:[%s197 + $0xf8] sm:$0xff] %v1077
        %p1110 = scmp.eq.s32.totalorder %s25, 1
        // Predicated region
        $region41: #{tpu_custom_call.1} parent=27 // pred_check
          %p1111 = pneg %p1110
        $region42: #{tpu_custom_call.1} parent=27 // pred_check_branch
          %1113 = sbr.rel (%p1111) target = $region44
        $region43: #{tpu_custom_call.1} parent=27 // pred_region
          %v1114 = vld [vmem:[#allocation2] sm:$0xff]
          %v1115 = vld [vmem:[#allocation2 + $0x8] sm:$0xff]
          %v1116 = vld [vmem:[#allocation2 + $0x10] sm:$0xff]
          %v1117 = vld [vmem:[#allocation2 + $0x18] sm:$0xff]
          %v1118 = vld [vmem:[#allocation2 + $0x20] sm:$0xff]
          %v1119 = vld [vmem:[#allocation2 + $0x28] sm:$0xff]
          %v1120 = vld [vmem:[#allocation2 + $0x30] sm:$0xff]
          %v1121 = vld [vmem:[#allocation2 + $0x38] sm:$0xff]
          %v1122 = vld [vmem:[#allocation2 + $0x40] sm:$0xff]
          %v1123 = vld [vmem:[#allocation2 + $0x48] sm:$0xff]
          %v1124 = vld [vmem:[#allocation2 + $0x50] sm:$0xff]
          %v1125 = vld [vmem:[#allocation2 + $0x58] sm:$0xff]
          %v1126 = vld [vmem:[#allocation2 + $0x60] sm:$0xff]
          %v1127 = vld [vmem:[#allocation2 + $0x68] sm:$0xff]
          %v1128 = vld [vmem:[#allocation2 + $0x70] sm:$0xff]
          %v1129 = vld [vmem:[#allocation2 + $0x78] sm:$0xff]
          %v1130 = vld [vmem:[#allocation2 + $0x80] sm:$0xff]
          %v1131 = vld [vmem:[#allocation2 + $0x88] sm:$0xff]
          %v1132 = vld [vmem:[#allocation2 + $0x90] sm:$0xff]
          %v1133 = vld [vmem:[#allocation2 + $0x98] sm:$0xff]
          %v1134 = vld [vmem:[#allocation2 + $0xa0] sm:$0xff]
          %v1135 = vld [vmem:[#allocation2 + $0xa8] sm:$0xff]
          %v1136 = vld [vmem:[#allocation2 + $0xb0] sm:$0xff]
          %v1137 = vld [vmem:[#allocation2 + $0xb8] sm:$0xff]
          %v1138 = vld [vmem:[#allocation2 + $0xc0] sm:$0xff]
          %v1139 = vld [vmem:[#allocation2 + $0xc8] sm:$0xff]
          %v1140 = vld [vmem:[#allocation2 + $0xd0] sm:$0xff]
          %v1141 = vld [vmem:[#allocation2 + $0xd8] sm:$0xff]
          %v1142 = vld [vmem:[#allocation2 + $0xe0] sm:$0xff]
          %v1143 = vld [vmem:[#allocation2 + $0xe8] sm:$0xff]
          %v1144 = vld [vmem:[#allocation2 + $0xf0] sm:$0xff]
          %v1145 = vld [vmem:[#allocation2 + $0xf8] sm:$0xff]
          %v1146 = vmax.f32 %v1114, 1.0
          %v1147 = vmax.f32 %v1115, 1.0
          %v1148 = vmax.f32 %v1116, 1.0
          %v1149 = vmax.f32 %v1117, 1.0
          %v1150 = vmax.f32 %v1118, 1.0
          %v1151 = vmax.f32 %v1119, 1.0
          %v1152 = vmax.f32 %v1120, 1.0
          %v1153 = vmax.f32 %v1121, 1.0
          %v1154 = vmax.f32 %v1122, 1.0
          %v1155 = vmax.f32 %v1123, 1.0
          %v1156 = vmax.f32 %v1124, 1.0
          %v1157 = vmax.f32 %v1125, 1.0
          %v1158 = vmax.f32 %v1126, 1.0
          %v1159 = vmax.f32 %v1127, 1.0
          %v1160 = vmax.f32 %v1128, 1.0
          %v1161 = vmax.f32 %v1129, 1.0
          %v1162 = vmax.f32 %v1130, 1.0
          %v1163 = vmax.f32 %v1131, 1.0
          %v1164 = vmax.f32 %v1132, 1.0
          %v1165 = vmax.f32 %v1133, 1.0
          %v1166 = vmax.f32 %v1134, 1.0
          %v1167 = vmax.f32 %v1135, 1.0
          %v1168 = vmax.f32 %v1136, 1.0
          %v1169 = vmax.f32 %v1137, 1.0
          %v1170 = vmax.f32 %v1138, 1.0
          %v1171 = vmax.f32 %v1139, 1.0
          %v1172 = vmax.f32 %v1140, 1.0
          %v1173 = vmax.f32 %v1141, 1.0
          %v1174 = vmax.f32 %v1142, 1.0
          %v1175 = vmax.f32 %v1143, 1.0
          %v1176 = vmax.f32 %v1144, 1.0
          %v1177 = vmax.f32 %v1145, 1.0
          %v1178 = vrcp.pop %v1146
          %v1179 = vmul.f32 %v1146, %v1178
          %v1180 = vsub.f32 1.0, %v1179
          %v1181 = vmul.f32 %v1178, %v1180
          %v1182 = vadd.f32 %v1178, %v1181
          %vm1183 = vweird.f32 %v1146
          %vm1184 = vweird.f32 %v1178
          %vm1185 = vmor %vm1183, %vm1184
          %v1186 = vsel %vm1185, %v1178, %v1182
          %v1187 = vand.u32 2147483647, %v1146
          %vm1188 = vcmp.eq.f32.partialorder %v1187, 8.507059e+37
          %v1189 = vand.u32 %v1146, 2147483648
          %v1190 = vor.u32 1.1754944e-38, %v1189
          %v1191 = vsel %vm1188, %v1190, %v1186
          %v1192 = vmul.f32 1.0, %v1191
          %v1193 = vrcp.pop %v1147
          %v1194 = vmul.f32 %v1147, %v1193
          %v1195 = vsub.f32 1.0, %v1194
          %v1196 = vmul.f32 %v1193, %v1195
          %v1197 = vadd.f32 %v1193, %v1196
          %vm1198 = vweird.f32 %v1147
          %vm1199 = vweird.f32 %v1193
          %vm1200 = vmor %vm1198, %vm1199
          %v1201 = vsel %vm1200, %v1193, %v1197
          %v1202 = vand.u32 2147483647, %v1147
          %vm1203 = vcmp.eq.f32.partialorder %v1202, 8.507059e+37
          %v1204 = vand.u32 %v1147, 2147483648
          %v1205 = vor.u32 1.1754944e-38, %v1204
          %v1206 = vsel %vm1203, %v1205, %v1201
          %v1207 = vmul.f32 1.0, %v1206
          %v1208 = vrcp.pop %v1148
          %v1209 = vmul.f32 %v1148, %v1208
          %v1210 = vsub.f32 1.0, %v1209
          %v1211 = vmul.f32 %v1208, %v1210
          %v1212 = vadd.f32 %v1208, %v1211
          %vm1213 = vweird.f32 %v1148
          %vm1214 = vweird.f32 %v1208
          %vm1215 = vmor %vm1213, %vm1214
          %v1216 = vsel %vm1215, %v1208, %v1212
          %v1217 = vand.u32 2147483647, %v1148
          %vm1218 = vcmp.eq.f32.partialorder %v1217, 8.507059e+37
          %v1219 = vand.u32 %v1148, 2147483648
          %v1220 = vor.u32 1.1754944e-38, %v1219
          %v1221 = vsel %vm1218, %v1220, %v1216
          %v1222 = vmul.f32 1.0, %v1221
          %v1223 = vrcp.pop %v1149
          %v1224 = vmul.f32 %v1149, %v1223
          %v1225 = vsub.f32 1.0, %v1224
          %v1226 = vmul.f32 %v1223, %v1225
          %v1227 = vadd.f32 %v1223, %v1226
          %vm1228 = vweird.f32 %v1149
          %vm1229 = vweird.f32 %v1223
          %vm1230 = vmor %vm1228, %vm1229
          %v1231 = vsel %vm1230, %v1223, %v1227
          %v1232 = vand.u32 2147483647, %v1149
          %vm1233 = vcmp.eq.f32.partialorder %v1232, 8.507059e+37
          %v1234 = vand.u32 %v1149, 2147483648
          %v1235 = vor.u32 1.1754944e-38, %v1234
          %v1236 = vsel %vm1233, %v1235, %v1231
          %v1237 = vmul.f32 1.0, %v1236
          %v1238 = vrcp.pop %v1150
          %v1239 = vmul.f32 %v1150, %v1238
          %v1240 = vsub.f32 1.0, %v1239
          %v1241 = vmul.f32 %v1238, %v1240
          %v1242 = vadd.f32 %v1238, %v1241
          %vm1243 = vweird.f32 %v1150
          %vm1244 = vweird.f32 %v1238
          %vm1245 = vmor %vm1243, %vm1244
          %v1246 = vsel %vm1245, %v1238, %v1242
          %v1247 = vand.u32 2147483647, %v1150
          %vm1248 = vcmp.eq.f32.partialorder %v1247, 8.507059e+37
          %v1249 = vand.u32 %v1150, 2147483648
          %v1250 = vor.u32 1.1754944e-38, %v1249
          %v1251 = vsel %vm1248, %v1250, %v1246
          %v1252 = vmul.f32 1.0, %v1251
          %v1253 = vrcp.pop %v1151
          %v1254 = vmul.f32 %v1151, %v1253
          %v1255 = vsub.f32 1.0, %v1254
          %v1256 = vmul.f32 %v1253, %v1255
          %v1257 = vadd.f32 %v1253, %v1256
          %vm1258 = vweird.f32 %v1151
          %vm1259 = vweird.f32 %v1253
          %vm1260 = vmor %vm1258, %vm1259
          %v1261 = vsel %vm1260, %v1253, %v1257
          %v1262 = vand.u32 2147483647, %v1151
          %vm1263 = vcmp.eq.f32.partialorder %v1262, 8.507059e+37
          %v1264 = vand.u32 %v1151, 2147483648
          %v1265 = vor.u32 1.1754944e-38, %v1264
          %v1266 = vsel %vm1263, %v1265, %v1261
          %v1267 = vmul.f32 1.0, %v1266
          %v1268 = vrcp.pop %v1152
          %v1269 = vmul.f32 %v1152, %v1268
          %v1270 = vsub.f32 1.0, %v1269
          %v1271 = vmul.f32 %v1268, %v1270
          %v1272 = vadd.f32 %v1268, %v1271
          %vm1273 = vweird.f32 %v1152
          %vm1274 = vweird.f32 %v1268
          %vm1275 = vmor %vm1273, %vm1274
          %v1276 = vsel %vm1275, %v1268, %v1272
          %v1277 = vand.u32 2147483647, %v1152
          %vm1278 = vcmp.eq.f32.partialorder %v1277, 8.507059e+37
          %v1279 = vand.u32 %v1152, 2147483648
          %v1280 = vor.u32 1.1754944e-38, %v1279
          %v1281 = vsel %vm1278, %v1280, %v1276
          %v1282 = vmul.f32 1.0, %v1281
          %v1283 = vrcp.pop %v1153
          %v1284 = vmul.f32 %v1153, %v1283
          %v1285 = vsub.f32 1.0, %v1284
          %v1286 = vmul.f32 %v1283, %v1285
          %v1287 = vadd.f32 %v1283, %v1286
          %vm1288 = vweird.f32 %v1153
          %vm1289 = vweird.f32 %v1283
          %vm1290 = vmor %vm1288, %vm1289
          %v1291 = vsel %vm1290, %v1283, %v1287
          %v1292 = vand.u32 2147483647, %v1153
          %vm1293 = vcmp.eq.f32.partialorder %v1292, 8.507059e+37
          %v1294 = vand.u32 %v1153, 2147483648
          %v1295 = vor.u32 1.1754944e-38, %v1294
          %v1296 = vsel %vm1293, %v1295, %v1291
          %v1297 = vmul.f32 1.0, %v1296
          %v1298 = vrcp.pop %v1154
          %v1299 = vmul.f32 %v1154, %v1298
          %v1300 = vsub.f32 1.0, %v1299
          %v1301 = vmul.f32 %v1298, %v1300
          %v1302 = vadd.f32 %v1298, %v1301
          %vm1303 = vweird.f32 %v1154
          %vm1304 = vweird.f32 %v1298
          %vm1305 = vmor %vm1303, %vm1304
          %v1306 = vsel %vm1305, %v1298, %v1302
          %v1307 = vand.u32 2147483647, %v1154
          %vm1308 = vcmp.eq.f32.partialorder %v1307, 8.507059e+37
          %v1309 = vand.u32 %v1154, 2147483648
          %v1310 = vor.u32 1.1754944e-38, %v1309
          %v1311 = vsel %vm1308, %v1310, %v1306
          %v1312 = vmul.f32 1.0, %v1311
          %v1313 = vrcp.pop %v1155
          %v1314 = vmul.f32 %v1155, %v1313
          %v1315 = vsub.f32 1.0, %v1314
          %v1316 = vmul.f32 %v1313, %v1315
          %v1317 = vadd.f32 %v1313, %v1316
          %vm1318 = vweird.f32 %v1155
          %vm1319 = vweird.f32 %v1313
          %vm1320 = vmor %vm1318, %vm1319
          %v1321 = vsel %vm1320, %v1313, %v1317
          %v1322 = vand.u32 2147483647, %v1155
          %vm1323 = vcmp.eq.f32.partialorder %v1322, 8.507059e+37
          %v1324 = vand.u32 %v1155, 2147483648
          %v1325 = vor.u32 1.1754944e-38, %v1324
          %v1326 = vsel %vm1323, %v1325, %v1321
          %v1327 = vmul.f32 1.0, %v1326
          %v1328 = vrcp.pop %v1156
          %v1329 = vmul.f32 %v1156, %v1328
          %v1330 = vsub.f32 1.0, %v1329
          %v1331 = vmul.f32 %v1328, %v1330
          %v1332 = vadd.f32 %v1328, %v1331
          %vm1333 = vweird.f32 %v1156
          %vm1334 = vweird.f32 %v1328
          %vm1335 = vmor %vm1333, %vm1334
          %v1336 = vsel %vm1335, %v1328, %v1332
          %v1337 = vand.u32 2147483647, %v1156
          %vm1338 = vcmp.eq.f32.partialorder %v1337, 8.507059e+37
          %v1339 = vand.u32 %v1156, 2147483648
          %v1340 = vor.u32 1.1754944e-38, %v1339
          %v1341 = vsel %vm1338, %v1340, %v1336
          %v1342 = vmul.f32 1.0, %v1341
          %v1343 = vrcp.pop %v1157
          %v1344 = vmul.f32 %v1157, %v1343
          %v1345 = vsub.f32 1.0, %v1344
          %v1346 = vmul.f32 %v1343, %v1345
          %v1347 = vadd.f32 %v1343, %v1346
          %vm1348 = vweird.f32 %v1157
          %vm1349 = vweird.f32 %v1343
          %vm1350 = vmor %vm1348, %vm1349
          %v1351 = vsel %vm1350, %v1343, %v1347
          %v1352 = vand.u32 2147483647, %v1157
          %vm1353 = vcmp.eq.f32.partialorder %v1352, 8.507059e+37
          %v1354 = vand.u32 %v1157, 2147483648
          %v1355 = vor.u32 1.1754944e-38, %v1354
          %v1356 = vsel %vm1353, %v1355, %v1351
          %v1357 = vmul.f32 1.0, %v1356
          %v1358 = vrcp.pop %v1158
          %v1359 = vmul.f32 %v1158, %v1358
          %v1360 = vsub.f32 1.0, %v1359
          %v1361 = vmul.f32 %v1358, %v1360
          %v1362 = vadd.f32 %v1358, %v1361
          %vm1363 = vweird.f32 %v1158
          %vm1364 = vweird.f32 %v1358
          %vm1365 = vmor %vm1363, %vm1364
          %v1366 = vsel %vm1365, %v1358, %v1362
          %v1367 = vand.u32 2147483647, %v1158
          %vm1368 = vcmp.eq.f32.partialorder %v1367, 8.507059e+37
          %v1369 = vand.u32 %v1158, 2147483648
          %v1370 = vor.u32 1.1754944e-38, %v1369
          %v1371 = vsel %vm1368, %v1370, %v1366
          %v1372 = vmul.f32 1.0, %v1371
          %v1373 = vrcp.pop %v1159
          %v1374 = vmul.f32 %v1159, %v1373
          %v1375 = vsub.f32 1.0, %v1374
          %v1376 = vmul.f32 %v1373, %v1375
          %v1377 = vadd.f32 %v1373, %v1376
          %vm1378 = vweird.f32 %v1159
          %vm1379 = vweird.f32 %v1373
          %vm1380 = vmor %vm1378, %vm1379
          %v1381 = vsel %vm1380, %v1373, %v1377
          %v1382 = vand.u32 2147483647, %v1159
          %vm1383 = vcmp.eq.f32.partialorder %v1382, 8.507059e+37
          %v1384 = vand.u32 %v1159, 2147483648
          %v1385 = vor.u32 1.1754944e-38, %v1384
          %v1386 = vsel %vm1383, %v1385, %v1381
          %v1387 = vmul.f32 1.0, %v1386
          %v1388 = vrcp.pop %v1160
          %v1389 = vmul.f32 %v1160, %v1388
          %v1390 = vsub.f32 1.0, %v1389
          %v1391 = vmul.f32 %v1388, %v1390
          %v1392 = vadd.f32 %v1388, %v1391
          %vm1393 = vweird.f32 %v1160
          %vm1394 = vweird.f32 %v1388
          %vm1395 = vmor %vm1393, %vm1394
          %v1396 = vsel %vm1395, %v1388, %v1392
          %v1397 = vand.u32 2147483647, %v1160
          %vm1398 = vcmp.eq.f32.partialorder %v1397, 8.507059e+37
          %v1399 = vand.u32 %v1160, 2147483648
          %v1400 = vor.u32 1.1754944e-38, %v1399
          %v1401 = vsel %vm1398, %v1400, %v1396
          %v1402 = vmul.f32 1.0, %v1401
          %v1403 = vrcp.pop %v1161
          %v1404 = vmul.f32 %v1161, %v1403
          %v1405 = vsub.f32 1.0, %v1404
          %v1406 = vmul.f32 %v1403, %v1405
          %v1407 = vadd.f32 %v1403, %v1406
          %vm1408 = vweird.f32 %v1161
          %vm1409 = vweird.f32 %v1403
          %vm1410 = vmor %vm1408, %vm1409
          %v1411 = vsel %vm1410, %v1403, %v1407
          %v1412 = vand.u32 2147483647, %v1161
          %vm1413 = vcmp.eq.f32.partialorder %v1412, 8.507059e+37
          %v1414 = vand.u32 %v1161, 2147483648
          %v1415 = vor.u32 1.1754944e-38, %v1414
          %v1416 = vsel %vm1413, %v1415, %v1411
          %v1417 = vmul.f32 1.0, %v1416
          %v1418 = vrcp.pop %v1162
          %v1419 = vmul.f32 %v1162, %v1418
          %v1420 = vsub.f32 1.0, %v1419
          %v1421 = vmul.f32 %v1418, %v1420
          %v1422 = vadd.f32 %v1418, %v1421
          %vm1423 = vweird.f32 %v1162
          %vm1424 = vweird.f32 %v1418
          %vm1425 = vmor %vm1423, %vm1424
          %v1426 = vsel %vm1425, %v1418, %v1422
          %v1427 = vand.u32 2147483647, %v1162
          %vm1428 = vcmp.eq.f32.partialorder %v1427, 8.507059e+37
          %v1429 = vand.u32 %v1162, 2147483648
          %v1430 = vor.u32 1.1754944e-38, %v1429
          %v1431 = vsel %vm1428, %v1430, %v1426
          %v1432 = vmul.f32 1.0, %v1431
          %v1433 = vrcp.pop %v1163
          %v1434 = vmul.f32 %v1163, %v1433
          %v1435 = vsub.f32 1.0, %v1434
          %v1436 = vmul.f32 %v1433, %v1435
          %v1437 = vadd.f32 %v1433, %v1436
          %vm1438 = vweird.f32 %v1163
          %vm1439 = vweird.f32 %v1433
          %vm1440 = vmor %vm1438, %vm1439
          %v1441 = vsel %vm1440, %v1433, %v1437
          %v1442 = vand.u32 2147483647, %v1163
          %vm1443 = vcmp.eq.f32.partialorder %v1442, 8.507059e+37
          %v1444 = vand.u32 %v1163, 2147483648
          %v1445 = vor.u32 1.1754944e-38, %v1444
          %v1446 = vsel %vm1443, %v1445, %v1441
          %v1447 = vmul.f32 1.0, %v1446
          %v1448 = vrcp.pop %v1164
          %v1449 = vmul.f32 %v1164, %v1448
          %v1450 = vsub.f32 1.0, %v1449
          %v1451 = vmul.f32 %v1448, %v1450
          %v1452 = vadd.f32 %v1448, %v1451
          %vm1453 = vweird.f32 %v1164
          %vm1454 = vweird.f32 %v1448
          %vm1455 = vmor %vm1453, %vm1454
          %v1456 = vsel %vm1455, %v1448, %v1452
          %v1457 = vand.u32 2147483647, %v1164
          %vm1458 = vcmp.eq.f32.partialorder %v1457, 8.507059e+37
          %v1459 = vand.u32 %v1164, 2147483648
          %v1460 = vor.u32 1.1754944e-38, %v1459
          %v1461 = vsel %vm1458, %v1460, %v1456
          %v1462 = vmul.f32 1.0, %v1461
          %v1463 = vrcp.pop %v1165
          %v1464 = vmul.f32 %v1165, %v1463
          %v1465 = vsub.f32 1.0, %v1464
          %v1466 = vmul.f32 %v1463, %v1465
          %v1467 = vadd.f32 %v1463, %v1466
          %vm1468 = vweird.f32 %v1165
          %vm1469 = vweird.f32 %v1463
          %vm1470 = vmor %vm1468, %vm1469
          %v1471 = vsel %vm1470, %v1463, %v1467
          %v1472 = vand.u32 2147483647, %v1165
          %vm1473 = vcmp.eq.f32.partialorder %v1472, 8.507059e+37
          %v1474 = vand.u32 %v1165, 2147483648
          %v1475 = vor.u32 1.1754944e-38, %v1474
          %v1476 = vsel %vm1473, %v1475, %v1471
          %v1477 = vmul.f32 1.0, %v1476
          %v1478 = vrcp.pop %v1166
          %v1479 = vmul.f32 %v1166, %v1478
          %v1480 = vsub.f32 1.0, %v1479
          %v1481 = vmul.f32 %v1478, %v1480
          %v1482 = vadd.f32 %v1478, %v1481
          %vm1483 = vweird.f32 %v1166
          %vm1484 = vweird.f32 %v1478
          %vm1485 = vmor %vm1483, %vm1484
          %v1486 = vsel %vm1485, %v1478, %v1482
          %v1487 = vand.u32 2147483647, %v1166
          %vm1488 = vcmp.eq.f32.partialorder %v1487, 8.507059e+37
          %v1489 = vand.u32 %v1166, 2147483648
          %v1490 = vor.u32 1.1754944e-38, %v1489
          %v1491 = vsel %vm1488, %v1490, %v1486
          %v1492 = vmul.f32 1.0, %v1491
          %v1493 = vrcp.pop %v1167
          %v1494 = vmul.f32 %v1167, %v1493
          %v1495 = vsub.f32 1.0, %v1494
          %v1496 = vmul.f32 %v1493, %v1495
          %v1497 = vadd.f32 %v1493, %v1496
          %vm1498 = vweird.f32 %v1167
          %vm1499 = vweird.f32 %v1493
          %vm1500 = vmor %vm1498, %vm1499
          %v1501 = vsel %vm1500, %v1493, %v1497
          %v1502 = vand.u32 2147483647, %v1167
          %vm1503 = vcmp.eq.f32.partialorder %v1502, 8.507059e+37
          %v1504 = vand.u32 %v1167, 2147483648
          %v1505 = vor.u32 1.1754944e-38, %v1504
          %v1506 = vsel %vm1503, %v1505, %v1501
          %v1507 = vmul.f32 1.0, %v1506
          %v1508 = vrcp.pop %v1168
          %v1509 = vmul.f32 %v1168, %v1508
          %v1510 = vsub.f32 1.0, %v1509
          %v1511 = vmul.f32 %v1508, %v1510
          %v1512 = vadd.f32 %v1508, %v1511
          %vm1513 = vweird.f32 %v1168
          %vm1514 = vweird.f32 %v1508
          %vm1515 = vmor %vm1513, %vm1514
          %v1516 = vsel %vm1515, %v1508, %v1512
          %v1517 = vand.u32 2147483647, %v1168
          %vm1518 = vcmp.eq.f32.partialorder %v1517, 8.507059e+37
          %v1519 = vand.u32 %v1168, 2147483648
          %v1520 = vor.u32 1.1754944e-38, %v1519
          %v1521 = vsel %vm1518, %v1520, %v1516
          %v1522 = vmul.f32 1.0, %v1521
          %v1523 = vrcp.pop %v1169
          %v1524 = vmul.f32 %v1169, %v1523
          %v1525 = vsub.f32 1.0, %v1524
          %v1526 = vmul.f32 %v1523, %v1525
          %v1527 = vadd.f32 %v1523, %v1526
          %vm1528 = vweird.f32 %v1169
          %vm1529 = vweird.f32 %v1523
          %vm1530 = vmor %vm1528, %vm1529
          %v1531 = vsel %vm1530, %v1523, %v1527
          %v1532 = vand.u32 2147483647, %v1169
          %vm1533 = vcmp.eq.f32.partialorder %v1532, 8.507059e+37
          %v1534 = vand.u32 %v1169, 2147483648
          %v1535 = vor.u32 1.1754944e-38, %v1534
          %v1536 = vsel %vm1533, %v1535, %v1531
          %v1537 = vmul.f32 1.0, %v1536
          %v1538 = vrcp.pop %v1170
          %v1539 = vmul.f32 %v1170, %v1538
          %v1540 = vsub.f32 1.0, %v1539
          %v1541 = vmul.f32 %v1538, %v1540
          %v1542 = vadd.f32 %v1538, %v1541
          %vm1543 = vweird.f32 %v1170
          %vm1544 = vweird.f32 %v1538
          %vm1545 = vmor %vm1543, %vm1544
          %v1546 = vsel %vm1545, %v1538, %v1542
          %v1547 = vand.u32 2147483647, %v1170
          %vm1548 = vcmp.eq.f32.partialorder %v1547, 8.507059e+37
          %v1549 = vand.u32 %v1170, 2147483648
          %v1550 = vor.u32 1.1754944e-38, %v1549
          %v1551 = vsel %vm1548, %v1550, %v1546
          %v1552 = vmul.f32 1.0, %v1551
          %v1553 = vrcp.pop %v1171
          %v1554 = vmul.f32 %v1171, %v1553
          %v1555 = vsub.f32 1.0, %v1554
          %v1556 = vmul.f32 %v1553, %v1555
          %v1557 = vadd.f32 %v1553, %v1556
          %vm1558 = vweird.f32 %v1171
          %vm1559 = vweird.f32 %v1553
          %vm1560 = vmor %vm1558, %vm1559
          %v1561 = vsel %vm1560, %v1553, %v1557
          %v1562 = vand.u32 2147483647, %v1171
          %vm1563 = vcmp.eq.f32.partialorder %v1562, 8.507059e+37
          %v1564 = vand.u32 %v1171, 2147483648
          %v1565 = vor.u32 1.1754944e-38, %v1564
          %v1566 = vsel %vm1563, %v1565, %v1561
          %v1567 = vmul.f32 1.0, %v1566
          %v1568 = vrcp.pop %v1172
          %v1569 = vmul.f32 %v1172, %v1568
          %v1570 = vsub.f32 1.0, %v1569
          %v1571 = vmul.f32 %v1568, %v1570
          %v1572 = vadd.f32 %v1568, %v1571
          %vm1573 = vweird.f32 %v1172
          %vm1574 = vweird.f32 %v1568
          %vm1575 = vmor %vm1573, %vm1574
          %v1576 = vsel %vm1575, %v1568, %v1572
          %v1577 = vand.u32 2147483647, %v1172
          %vm1578 = vcmp.eq.f32.partialorder %v1577, 8.507059e+37
          %v1579 = vand.u32 %v1172, 2147483648
          %v1580 = vor.u32 1.1754944e-38, %v1579
          %v1581 = vsel %vm1578, %v1580, %v1576
          %v1582 = vmul.f32 1.0, %v1581
          %v1583 = vrcp.pop %v1173
          %v1584 = vmul.f32 %v1173, %v1583
          %v1585 = vsub.f32 1.0, %v1584
          %v1586 = vmul.f32 %v1583, %v1585
          %v1587 = vadd.f32 %v1583, %v1586
          %vm1588 = vweird.f32 %v1173
          %vm1589 = vweird.f32 %v1583
          %vm1590 = vmor %vm1588, %vm1589
          %v1591 = vsel %vm1590, %v1583, %v1587
          %v1592 = vand.u32 2147483647, %v1173
          %vm1593 = vcmp.eq.f32.partialorder %v1592, 8.507059e+37
          %v1594 = vand.u32 %v1173, 2147483648
          %v1595 = vor.u32 1.1754944e-38, %v1594
          %v1596 = vsel %vm1593, %v1595, %v1591
          %v1597 = vmul.f32 1.0, %v1596
          %v1598 = vrcp.pop %v1174
          %v1599 = vmul.f32 %v1174, %v1598
          %v1600 = vsub.f32 1.0, %v1599
          %v1601 = vmul.f32 %v1598, %v1600
          %v1602 = vadd.f32 %v1598, %v1601
          %vm1603 = vweird.f32 %v1174
          %vm1604 = vweird.f32 %v1598
          %vm1605 = vmor %vm1603, %vm1604
          %v1606 = vsel %vm1605, %v1598, %v1602
          %v1607 = vand.u32 2147483647, %v1174
          %vm1608 = vcmp.eq.f32.partialorder %v1607, 8.507059e+37
          %v1609 = vand.u32 %v1174, 2147483648
          %v1610 = vor.u32 1.1754944e-38, %v1609
          %v1611 = vsel %vm1608, %v1610, %v1606
          %v1612 = vmul.f32 1.0, %v1611
          %v1613 = vrcp.pop %v1175
          %v1614 = vmul.f32 %v1175, %v1613
          %v1615 = vsub.f32 1.0, %v1614
          %v1616 = vmul.f32 %v1613, %v1615
          %v1617 = vadd.f32 %v1613, %v1616
          %vm1618 = vweird.f32 %v1175
          %vm1619 = vweird.f32 %v1613
          %vm1620 = vmor %vm1618, %vm1619
          %v1621 = vsel %vm1620, %v1613, %v1617
          %v1622 = vand.u32 2147483647, %v1175
          %vm1623 = vcmp.eq.f32.partialorder %v1622, 8.507059e+37
          %v1624 = vand.u32 %v1175, 2147483648
          %v1625 = vor.u32 1.1754944e-38, %v1624
          %v1626 = vsel %vm1623, %v1625, %v1621
          %v1627 = vmul.f32 1.0, %v1626
          %v1628 = vrcp.pop %v1176
          %v1629 = vmul.f32 %v1176, %v1628
          %v1630 = vsub.f32 1.0, %v1629
          %v1631 = vmul.f32 %v1628, %v1630
          %v1632 = vadd.f32 %v1628, %v1631
          %vm1633 = vweird.f32 %v1176
          %vm1634 = vweird.f32 %v1628
          %vm1635 = vmor %vm1633, %vm1634
          %v1636 = vsel %vm1635, %v1628, %v1632
          %v1637 = vand.u32 2147483647, %v1176
          %vm1638 = vcmp.eq.f32.partialorder %v1637, 8.507059e+37
          %v1639 = vand.u32 %v1176, 2147483648
          %v1640 = vor.u32 1.1754944e-38, %v1639
          %v1641 = vsel %vm1638, %v1640, %v1636
          %v1642 = vmul.f32 1.0, %v1641
          %v1643 = vrcp.pop %v1177
          %v1644 = vmul.f32 %v1177, %v1643
          %v1645 = vsub.f32 1.0, %v1644
          %v1646 = vmul.f32 %v1643, %v1645
          %v1647 = vadd.f32 %v1643, %v1646
          %vm1648 = vweird.f32 %v1177
          %vm1649 = vweird.f32 %v1643
          %vm1650 = vmor %vm1648, %vm1649
          %v1651 = vsel %vm1650, %v1643, %v1647
          %v1652 = vand.u32 2147483647, %v1177
          %vm1653 = vcmp.eq.f32.partialorder %v1652, 8.507059e+37
          %v1654 = vand.u32 %v1177, 2147483648
          %v1655 = vor.u32 1.1754944e-38, %v1654
          %v1656 = vsel %vm1653, %v1655, %v1651
          %v1657 = vmul.f32 1.0, %v1656
          %v1658 = vld [vmem:[%s197] sm:$0xff]
          %v1659 = vld [vmem:[%s197 + $0x8] sm:$0xff]
          %v1660 = vld [vmem:[%s197 + $0x10] sm:$0xff]
          %v1661 = vld [vmem:[%s197 + $0x18] sm:$0xff]
          %v1662 = vld [vmem:[%s197 + $0x20] sm:$0xff]
          %v1663 = vld [vmem:[%s197 + $0x28] sm:$0xff]
          %v1664 = vld [vmem:[%s197 + $0x30] sm:$0xff]
          %v1665 = vld [vmem:[%s197 + $0x38] sm:$0xff]
          %v1666 = vld [vmem:[%s197 + $0x40] sm:$0xff]
          %v1667 = vld [vmem:[%s197 + $0x48] sm:$0xff]
          %v1668 = vld [vmem:[%s197 + $0x50] sm:$0xff]
          %v1669 = vld [vmem:[%s197 + $0x58] sm:$0xff]
          %v1670 = vld [vmem:[%s197 + $0x60] sm:$0xff]
          %v1671 = vld [vmem:[%s197 + $0x68] sm:$0xff]
          %v1672 = vld [vmem:[%s197 + $0x70] sm:$0xff]
          %v1673 = vld [vmem:[%s197 + $0x78] sm:$0xff]
          %v1674 = vld [vmem:[%s197 + $0x80] sm:$0xff]
          %v1675 = vld [vmem:[%s197 + $0x88] sm:$0xff]
          %v1676 = vld [vmem:[%s197 + $0x90] sm:$0xff]
          %v1677 = vld [vmem:[%s197 + $0x98] sm:$0xff]
          %v1678 = vld [vmem:[%s197 + $0xa0] sm:$0xff]
          %v1679 = vld [vmem:[%s197 + $0xa8] sm:$0xff]
          %v1680 = vld [vmem:[%s197 + $0xb0] sm:$0xff]
          %v1681 = vld [vmem:[%s197 + $0xb8] sm:$0xff]
          %v1682 = vld [vmem:[%s197 + $0xc0] sm:$0xff]
          %v1683 = vld [vmem:[%s197 + $0xc8] sm:$0xff]
          %v1684 = vld [vmem:[%s197 + $0xd0] sm:$0xff]
          %v1685 = vld [vmem:[%s197 + $0xd8] sm:$0xff]
          %v1686 = vld [vmem:[%s197 + $0xe0] sm:$0xff]
          %v1687 = vld [vmem:[%s197 + $0xe8] sm:$0xff]
          %v1688 = vld [vmem:[%s197 + $0xf0] sm:$0xff]
          %v1689 = vld [vmem:[%s197 + $0xf8] sm:$0xff]
          %1691 = vset.pattern.permute.xlu0 0
          %1692 = vperm.xlu0 %1691, %v1192
          %v1693 = vpop.permute.xlu0 %1692
          %1696 = vset.pattern.permute.xlu0 0
          %1697 = vperm.xlu0 %1696, %v1207
          %v1698 = vpop.permute.xlu0 %1697
          %1701 = vset.pattern.permute.xlu0 0
          %1702 = vperm.xlu0 %1701, %v1222
          %v1703 = vpop.permute.xlu0 %1702
          %1706 = vset.pattern.permute.xlu0 0
          %1707 = vperm.xlu0 %1706, %v1237
          %v1708 = vpop.permute.xlu0 %1707
          %1711 = vset.pattern.permute.xlu0 0
          %1712 = vperm.xlu0 %1711, %v1252
          %v1713 = vpop.permute.xlu0 %1712
          %1716 = vset.pattern.permute.xlu0 0
          %1717 = vperm.xlu0 %1716, %v1267
          %v1718 = vpop.permute.xlu0 %1717
          %1721 = vset.pattern.permute.xlu0 0
          %1722 = vperm.xlu0 %1721, %v1282
          %v1723 = vpop.permute.xlu0 %1722
          %1726 = vset.pattern.permute.xlu0 0
          %1727 = vperm.xlu0 %1726, %v1297
          %v1728 = vpop.permute.xlu0 %1727
          %1731 = vset.pattern.permute.xlu0 0
          %1732 = vperm.xlu0 %1731, %v1312
          %v1733 = vpop.permute.xlu0 %1732
          %1736 = vset.pattern.permute.xlu0 0
          %1737 = vperm.xlu0 %1736, %v1327
          %v1738 = vpop.permute.xlu0 %1737
          %1741 = vset.pattern.permute.xlu0 0
          %1742 = vperm.xlu0 %1741, %v1342
          %v1743 = vpop.permute.xlu0 %1742
          %1746 = vset.pattern.permute.xlu0 0
          %1747 = vperm.xlu0 %1746, %v1357
          %v1748 = vpop.permute.xlu0 %1747
          %1751 = vset.pattern.permute.xlu0 0
          %1752 = vperm.xlu0 %1751, %v1372
          %v1753 = vpop.permute.xlu0 %1752
          %1756 = vset.pattern.permute.xlu0 0
          %1757 = vperm.xlu0 %1756, %v1387
          %v1758 = vpop.permute.xlu0 %1757
          %1761 = vset.pattern.permute.xlu0 0
          %1762 = vperm.xlu0 %1761, %v1402
          %v1763 = vpop.permute.xlu0 %1762
          %1766 = vset.pattern.permute.xlu0 0
          %1767 = vperm.xlu0 %1766, %v1417
          %v1768 = vpop.permute.xlu0 %1767
          %1771 = vset.pattern.permute.xlu0 0
          %1772 = vperm.xlu0 %1771, %v1432
          %v1773 = vpop.permute.xlu0 %1772
          %1776 = vset.pattern.permute.xlu0 0
          %1777 = vperm.xlu0 %1776, %v1447
          %v1778 = vpop.permute.xlu0 %1777
          %1781 = vset.pattern.permute.xlu0 0
          %1782 = vperm.xlu0 %1781, %v1462
          %v1783 = vpop.permute.xlu0 %1782
          %1786 = vset.pattern.permute.xlu0 0
          %1787 = vperm.xlu0 %1786, %v1477
          %v1788 = vpop.permute.xlu0 %1787
          %1791 = vset.pattern.permute.xlu0 0
          %1792 = vperm.xlu0 %1791, %v1492
          %v1793 = vpop.permute.xlu0 %1792
          %1796 = vset.pattern.permute.xlu0 0
          %1797 = vperm.xlu0 %1796, %v1507
          %v1798 = vpop.permute.xlu0 %1797
          %1801 = vset.pattern.permute.xlu0 0
          %1802 = vperm.xlu0 %1801, %v1522
          %v1803 = vpop.permute.xlu0 %1802
          %1806 = vset.pattern.permute.xlu0 0
          %1807 = vperm.xlu0 %1806, %v1537
          %v1808 = vpop.permute.xlu0 %1807
          %1811 = vset.pattern.permute.xlu0 0
          %1812 = vperm.xlu0 %1811, %v1552
          %v1813 = vpop.permute.xlu0 %1812
          %1816 = vset.pattern.permute.xlu0 0
          %1817 = vperm.xlu0 %1816, %v1567
          %v1818 = vpop.permute.xlu0 %1817
          %1821 = vset.pattern.permute.xlu0 0
          %1822 = vperm.xlu0 %1821, %v1582
          %v1823 = vpop.permute.xlu0 %1822
          %1826 = vset.pattern.permute.xlu0 0
          %1827 = vperm.xlu0 %1826, %v1597
          %v1828 = vpop.permute.xlu0 %1827
          %1831 = vset.pattern.permute.xlu0 0
          %1832 = vperm.xlu0 %1831, %v1612
          %v1833 = vpop.permute.xlu0 %1832
          %1836 = vset.pattern.permute.xlu0 0
          %1837 = vperm.xlu0 %1836, %v1627
          %v1838 = vpop.permute.xlu0 %1837
          %1841 = vset.pattern.permute.xlu0 0
          %1842 = vperm.xlu0 %1841, %v1642
          %v1843 = vpop.permute.xlu0 %1842
          %1846 = vset.pattern.permute.xlu0 0
          %1847 = vperm.xlu0 %1846, %v1657
          %v1848 = vpop.permute.xlu0 %1847
          %v1850 = vmul.f32 %v1658, %v1693
          %v1851 = vmul.f32 %v1659, %v1698
          %v1852 = vmul.f32 %v1660, %v1703
          %v1853 = vmul.f32 %v1661, %v1708
          %v1854 = vmul.f32 %v1662, %v1713
          %v1855 = vmul.f32 %v1663, %v1718
          %v1856 = vmul.f32 %v1664, %v1723
          %v1857 = vmul.f32 %v1665, %v1728
          %v1858 = vmul.f32 %v1666, %v1733
          %v1859 = vmul.f32 %v1667, %v1738
          %v1860 = vmul.f32 %v1668, %v1743
          %v1861 = vmul.f32 %v1669, %v1748
          %v1862 = vmul.f32 %v1670, %v1753
          %v1863 = vmul.f32 %v1671, %v1758
          %v1864 = vmul.f32 %v1672, %v1763
          %v1865 = vmul.f32 %v1673, %v1768
          %v1866 = vmul.f32 %v1674, %v1773
          %v1867 = vmul.f32 %v1675, %v1778
          %v1868 = vmul.f32 %v1676, %v1783
          %v1869 = vmul.f32 %v1677, %v1788
          %v1870 = vmul.f32 %v1678, %v1793
          %v1871 = vmul.f32 %v1679, %v1798
          %v1872 = vmul.f32 %v1680, %v1803
          %v1873 = vmul.f32 %v1681, %v1808
          %v1874 = vmul.f32 %v1682, %v1813
          %v1875 = vmul.f32 %v1683, %v1818
          %v1876 = vmul.f32 %v1684, %v1823
          %v1877 = vmul.f32 %v1685, %v1828
          %v1878 = vmul.f32 %v1686, %v1833
          %v1879 = vmul.f32 %v1687, %v1838
          %v1880 = vmul.f32 %v1688, %v1843
          %v1881 = vmul.f32 %v1689, %v1848
          %1882 = vst [vmem:[%s197] sm:$0xff] %v1850
          %1883 = vst [vmem:[%s197 + $0x8] sm:$0xff] %v1851
          %1884 = vst [vmem:[%s197 + $0x10] sm:$0xff] %v1852
          %1885 = vst [vmem:[%s197 + $0x18] sm:$0xff] %v1853
          %1886 = vst [vmem:[%s197 + $0x20] sm:$0xff] %v1854
          %1887 = vst [vmem:[%s197 + $0x28] sm:$0xff] %v1855
          %1888 = vst [vmem:[%s197 + $0x30] sm:$0xff] %v1856
          %1889 = vst [vmem:[%s197 + $0x38] sm:$0xff] %v1857
          %1890 = vst [vmem:[%s197 + $0x40] sm:$0xff] %v1858
          %1891 = vst [vmem:[%s197 + $0x48] sm:$0xff] %v1859
          %1892 = vst [vmem:[%s197 + $0x50] sm:$0xff] %v1860
          %1893 = vst [vmem:[%s197 + $0x58] sm:$0xff] %v1861
          %1894 = vst [vmem:[%s197 + $0x60] sm:$0xff] %v1862
          %1895 = vst [vmem:[%s197 + $0x68] sm:$0xff] %v1863
          %1896 = vst [vmem:[%s197 + $0x70] sm:$0xff] %v1864
          %1897 = vst [vmem:[%s197 + $0x78] sm:$0xff] %v1865
          %1898 = vst [vmem:[%s197 + $0x80] sm:$0xff] %v1866
          %1899 = vst [vmem:[%s197 + $0x88] sm:$0xff] %v1867
          %1900 = vst [vmem:[%s197 + $0x90] sm:$0xff] %v1868
          %1901 = vst [vmem:[%s197 + $0x98] sm:$0xff] %v1869
          %1902 = vst [vmem:[%s197 + $0xa0] sm:$0xff] %v1870
          %1903 = vst [vmem:[%s197 + $0xa8] sm:$0xff] %v1871
          %1904 = vst [vmem:[%s197 + $0xb0] sm:$0xff] %v1872
          %1905 = vst [vmem:[%s197 + $0xb8] sm:$0xff] %v1873
          %1906 = vst [vmem:[%s197 + $0xc0] sm:$0xff] %v1874
          %1907 = vst [vmem:[%s197 + $0xc8] sm:$0xff] %v1875
          %1908 = vst [vmem:[%s197 + $0xd0] sm:$0xff] %v1876
          %1909 = vst [vmem:[%s197 + $0xd8] sm:$0xff] %v1877
          %1910 = vst [vmem:[%s197 + $0xe0] sm:$0xff] %v1878
          %1911 = vst [vmem:[%s197 + $0xe8] sm:$0xff] %v1879
          %1912 = vst [vmem:[%s197 + $0xf0] sm:$0xff] %v1880
          %1913 = vst [vmem:[%s197 + $0xf8] sm:$0xff] %v1881
        $region44: #{tpu_custom_call.1} parent=27 // pred_fallthru
          _
        %s1914 = sand.u32 %s89, 1
        %s1915 = scalar_lea.sflag [#allocation5], %s1914
        %s1916 = sand.u32 %s89, 1
        %s1917 = smul.addr %s1916, 256
        %s1918 = scalar_lea.vmem [#allocation8], %s1917
        // Predicated region
        $region45: #{tpu_custom_call.1} parent=27 // pred_check
          %p1919 = pneg %p99
        $region46: #{tpu_custom_call.1} parent=27 // pred_check_branch
          %1921 = sbr.rel (%p1919) target = $region48
        $region47: #{tpu_custom_call.1} parent=27 // pred_region
          %s1922 = smul.u32 32, %s24
          %1924 = vsyncadd %s1915, 0
          %s1925 = smul.addr %s1922, 8
          %s1926 = scalar_lea.hbm %s2, %s1925
          %s1927 = sshll.u32 %s1918, 4
          %s1928 = int_to_ptr.vmem [resolvable:$true] %s1927
          %s1929 = sshll.u32 %s1926, 4
          %s1930 = int_to_ptr.hbm [resolvable:$true] %s1929
          %1935 = dma.vmem_to_hbm [thread:$0]  %s1928, 4096, %s1930, %s1915, 128, 128, 8
        $region48: #{tpu_custom_call.1} parent=27 // pred_fallthru
          _
      $region28: #{tpu_custom_call.1} parent=5 // pred_fallthru
        _
      %p1936 = scmp.le.s32.totalorder 2, %s15
      // Predicated region
      $region49: #{tpu_custom_call.1} parent=5 // pred_check
        %p1937 = pneg %p1936
      $region50: #{tpu_custom_call.1} parent=5 // pred_check_branch
        %1939 = sbr.rel (%p1937) target = $region52
      $region51: #{tpu_custom_call.1} parent=5 // pred_region
        %s1940 = ssub.s32 %s15, 2
        // Predicated region
        $region53: #{tpu_custom_call.1} parent=51 // pred_check
          %p1941 = pneg %p105
        $region54: #{tpu_custom_call.1} parent=51 // pred_check_branch
          %1943 = sbr.rel (%p1941) target = $region56
        $region55: #{tpu_custom_call.1} parent=51 // pred_region
          %s1944 = sand.u32 %s90, 1
          %s1945 = scalar_lea.sflag [#allocation5], %s1944
          %s1946 = sand.u32 %s90, 1
          %s1947 = smul.addr %s1946, 256
          %s1948 = scalar_lea.vmem [#allocation8], %s1947
          %1950 = dma.done %s1945, 4096
        $region56: #{tpu_custom_call.1} parent=51 // pred_fallthru
          _
      $region52: #{tpu_custom_call.1} parent=5 // pred_fallthru
        _
    $region6: #{tpu_custom_call.1} parent=1 // loop_footer
      %s19 = sadd.s32 1, %s15
    $region7: #{tpu_custom_call.1} parent=1 // loop_footer_branch
      %14 = sbr.rel target = $region3
    $region8: #{tpu_custom_call.1} parent=1 // loop_exit
      _
    %1951 = vsyncpa [#allocation4], 1
    %s1952 = scalar_lea.sflag [#allocation4], 1
    %1953 = vsyncpa %s1952, 1
    %1954 = vsyncpa [#allocation7], 1
    %1955 = vsyncpa [#allocation5], 1
    %s1956 = scalar_lea.sflag [#allocation5], 1
    %1957 = vsyncpa %s1956, 1

</llo_original>
